<compile_context>
chip_gen: v7x
topology: tpu7x:2x2x1
jax: 0.10.0
libtpu: 0.0.40
codegen_flags: <defaults>
</compile_context>

<pallas_src>
import math

import jax
import jax.numpy as jnp
import numpy as np
from jax.experimental import pallas as pl
from jax.experimental.pallas import tpu as pltpu

# ----------------------------- config ---------------------------------------
D_MODEL = 32
NUM_HEADS = 4
HEAD_DIM = D_MODEL // NUM_HEADS
D_FF = 64
RANK = 4
ALPHA = 32
SCALING = ALPHA / RANK
LN_EPS = 1e-5
VEC_LANES = 128          # lane padding of the packed small-vector table
NEG_INF = -1e9           # same value torch's masked_fill uses


# ----------------------------- kernel ---------------------------------------
def _layer_norm(v, gamma, beta):
    mu = jnp.mean(v, axis=-1, keepdims=True)
    var = jnp.mean((v - mu) ** 2, axis=-1, keepdims=True)
    return (v - mu) * jax.lax.rsqrt(var + LN_EPS) * gamma + beta


def encoder_layer_kernel(
    x_ref,        # (T, D)     flattened tokens, T = B*S
    wqkv_ref,     # (D, 3D)    fused q|k|v, LoRA folded, (in, out) layout
    wo_ref,       # (D, D)     output projection, LoRA folded, (in, out)
    w1_ref,       # (D, D_FF)  fc1, LoRA folded, (in, out)
    w2_ref,       # (D_FF, D)  fc2, LoRA folded, (in, out)
    vecs_ref,     # (8, 128)   packed biases / LayerNorm params
    bias_ref,     # (T, T)     0 within a batch, -1e9 across batches
    out_ref,      # (T, D)
):
    x = x_ref[...]                                   # (T, D)

    vecs = vecs_ref[...]                             # (8, 128), one vreg tile
    b_qkv = vecs[0:1, : 3 * D_MODEL]                 # (1, 3D)
    b_o   = vecs[1:2, :D_MODEL]                      # (1, D)
    b_1   = vecs[2:3, :D_FF]                         # (1, D_FF)
    b_2   = vecs[3:4, :D_MODEL]                      # (1, D)
    g1    = vecs[4:5, :D_MODEL]
    be1   = vecs[5:6, :D_MODEL]
    g2    = vecs[6:7, :D_MODEL]
    be2   = vecs[7:8, :D_MODEL]

    # --- fused Q/K/V projection (LoRA already folded into the weight) ---
    qkv = jnp.dot(x, wqkv_ref[...], preferred_element_type=jnp.float32) + b_qkv

    # --- multi-head attention over all B*S tokens at once ---
    bias = bias_ref[...]                             # block-diag batch mask
    inv_sqrt_hd = 1.0 / math.sqrt(HEAD_DIM)
    head_ctx = []
    for h in range(NUM_HEADS):
        lo = h * HEAD_DIM
        q_h = qkv[:, lo:lo + HEAD_DIM]                                   # (T, hd)
        k_h = qkv[:, D_MODEL + lo:D_MODEL + lo + HEAD_DIM]               # (T, hd)
        v_h = qkv[:, 2 * D_MODEL + lo:2 * D_MODEL + lo + HEAD_DIM]       # (T, hd)
        s = jnp.dot(q_h, k_h.T, preferred_element_type=jnp.float32) * inv_sqrt_hd
        s = s + bias                                  # cross-batch -> -1e9
        s = s - jnp.max(s, axis=-1, keepdims=True)
        p = jnp.exp(s)                                # masked entries -> 0.0
        p = p * pl.reciprocal(jnp.sum(p, axis=-1, keepdims=True), approx=True)
        head_ctx.append(jnp.dot(p, v_h, preferred_element_type=jnp.float32))
    ctx = jnp.concatenate(head_ctx, axis=-1)          # (T, D)

    attn_out = jnp.dot(ctx, wo_ref[...], preferred_element_type=jnp.float32) + b_o

    # --- residual + layernorm 1 ---
    x1 = _layer_norm(x + attn_out, g1, be1)

    # --- position-wise feed-forward ---
    h1 = jnp.dot(x1, w1_ref[...], preferred_element_type=jnp.float32) + b_1
    h1 = jnp.maximum(h1, 0.0)
    h2 = jnp.dot(h1, w2_ref[...], preferred_element_type=jnp.float32) + b_2

    # --- residual + layernorm 2 ---
    out_ref[...] = _layer_norm(x1 + h2, g2, be2)


# ----------------------------- wrapper ---------------------------------------
def _fold_params(p):
    """Fold LoRA into base weights, fuse QKV, transpose to (in, out), and pack
    all small per-feature vectors into one (8, 128) f32 tile."""
    def merge(w, a, b_lora):
        # y = x @ W.T + b + ((x @ A.T) @ B.T) * s  ==  x @ (W + s * B @ A).T + b
        return (w + SCALING * (b_lora @ a)).T         # (in, out)

    wq = merge(p["wqkvo"][0], p["aqkvo"][0], p["blqkvo"][0])
    wk = merge(p["wqkvo"][1], p["aqkvo"][1], p["blqkvo"][1])
    wv = merge(p["wqkvo"][2], p["aqkvo"][2], p["blqkvo"][2])
    wo = merge(p["wqkvo"][3], p["aqkvo"][3], p["blqkvo"][3])
    w_qkv = jnp.concatenate([wq, wk, wv], axis=1)     # (D, 3D)
    w1 = merge(p["w1"], p["a1"], p["bl1"])            # (D, D_FF)
    w2 = merge(p["w2"], p["a2"], p["bl2"])            # (D_FF, D)

    b_qkv = jnp.concatenate(
        [p["bqkvo"][0], p["bqkvo"][1], p["bqkvo"][2]], axis=-1)   # (1, 3D)
    rows = [b_qkv, p["bqkvo"][3], p["b1"], p["b2"],
            p["g1"], p["be1"], p["g2"], p["be2"]]

    def pad_row(v):
        v = v.reshape(-1)
        return jnp.pad(v, (0, VEC_LANES - v.shape[0]))

    vecs = jnp.stack([pad_row(r) for r in rows]).astype(jnp.float32)  # (8, 128)
    return w_qkv, wo, w1, w2, vecs


def encoder_layer(x, params):
    B, S, D = x.shape
    T = B * S
    w_qkv, w_o, w1, w2, vecs = _fold_params(params)
    x2d = x.reshape(T, D)

    # Block-diagonal additive attention bias: a token only attends within its
    # own batch element (the module processes batch elements independently).
    batch_id = np.arange(T) // S
    attn_bias = jnp.asarray(
        np.where(batch_id[:, None] == batch_id[None, :], 0.0, NEG_INF),
        dtype=jnp.float32)

    args = (x2d, w_qkv, w_o, w1, w2, vecs, attn_bias)

    def full_spec(arr):
        nd = arr.ndim
        return pl.BlockSpec(arr.shape, lambda i, _nd=nd: (0,) * _nd)

    out2d = pl.pallas_call(
        encoder_layer_kernel,
        out_shape=jax.ShapeDtypeStruct((T, D), jnp.float32),
        grid_spec=pltpu.PrefetchScalarGridSpec(
            num_scalar_prefetch=0,
            grid=(1,),                       # collapsed grid: one kernel step
            in_specs=[full_spec(a) for a in args],
            out_specs=pl.BlockSpec((T, D), lambda i: (0, 0)),
        ),
        compiler_params=pltpu.CompilerParams(
            dimension_semantics=("arbitrary",)),
    )(*args)
    return out2d.reshape(B, S, D)


# ----------------------------- reference (pure JAX) ---------------------------
def encoder_layer_ref(x, p):
    def lora_lin(x, w, b, a, bl):
        return x @ w.T + b + (x @ a.T) @ bl.T * SCALING

    def ln(x, g, be):
        mu = jnp.mean(x, -1, keepdims=True)
        var = jnp.mean((x - mu) ** 2, -1, keepdims=True)
        return (x - mu) / jnp.sqrt(var + LN_EPS) * g + be

    B, S, D = x.shape
    q = lora_lin(x, p["wqkvo"][0], p["bqkvo"][0], p["aqkvo"][0], p["blqkvo"][0])
    k = lora_lin(x, p["wqkvo"][1], p["bqkvo"][1], p["aqkvo"][1], p["blqkvo"][1])
    v = lora_lin(x, p["wqkvo"][2], p["bqkvo"][2], p["aqkvo"][2], p["blqkvo"][2])
    q = q.reshape(B, S, NUM_HEADS, HEAD_DIM).transpose(0, 2, 1, 3)
    k = k.reshape(B, S, NUM_HEADS, HEAD_DIM).transpose(0, 2, 1, 3)
    v = v.reshape(B, S, NUM_HEADS, HEAD_DIM).transpose(0, 2, 1, 3)
    scores = jnp.einsum("bhqd,bhkd->bhqk", q, k) / math.sqrt(HEAD_DIM)
    attn = jax.nn.softmax(scores, axis=-1)
    ctx = jnp.einsum("bhqk,bhkd->bhqd", attn, v)
    ctx = ctx.transpose(0, 2, 1, 3).reshape(B, S, D)
    attn_out = lora_lin(ctx, p["wqkvo"][3], p["bqkvo"][3], p["aqkvo"][3], p["blqkvo"][3])
    x1 = ln(x + attn_out, p["g1"], p["be1"])
    h = jax.nn.relu(lora_lin(x1, p["w1"], p["b1"], p["a1"], p["bl1"]))
    h = lora_lin(h, p["w2"], p["b2"], p["a2"], p["bl2"])
    return ln(x1 + h, p["g2"], p["be2"])


# ----------------------------- params & main ----------------------------------
def init_params(key):
    ks = jax.random.split(key, 20)
    u = lambda k, shape, s=0.1: jax.random.uniform(k, shape, jnp.float32, -s, s)
    return {
        # stacked q, k, v, out LoRALinear params (PyTorch (out, in) convention)
        "wqkvo": u(ks[0], (4, D_MODEL, D_MODEL)),
        "bqkvo": u(ks[1], (4, 1, D_MODEL)),
        "aqkvo": u(ks[2], (4, RANK, D_MODEL)),
        "blqkvo": u(ks[3], (4, D_MODEL, RANK)),
        # fc1
        "w1": u(ks[4], (D_FF, D_MODEL)),
        "b1": u(ks[5], (1, D_FF)),
        "a1": u(ks[6], (RANK, D_MODEL)),
        "bl1": u(ks[7], (D_FF, RANK)),
        # fc2
        "w2": u(ks[8], (D_MODEL, D_FF)),
        "b2": u(ks[9], (1, D_MODEL)),
        "a2": u(ks[10], (RANK, D_FF)),
        "bl2": u(ks[11], (D_MODEL, RANK)),
        # layer norms
        "g1": jnp.ones((1, D_MODEL), jnp.float32),
        "be1": jnp.zeros((1, D_MODEL), jnp.float32),
        "g2": jnp.ones((1, D_MODEL), jnp.float32),
        "be2": jnp.zeros((1, D_MODEL), jnp.float32),
    }


if __name__ == "__main__":
    key = jax.random.PRNGKey(0)
    k_x, k_p = jax.random.split(key)
    B, S = 2, 8
    x = jax.random.normal(k_x, (B, S, D_MODEL), jnp.float32)
    params = init_params(k_p)

    out = jax.block_until_ready(encoder_layer(x, params))
    ref = jax.block_until_ready(encoder_layer_ref(x, params))

    # Tolerance is slightly looser than f32 roundoff because the kernel uses
    # pl.reciprocal(..., approx=True) for the softmax normalization.
    np.testing.assert_allclose(np.asarray(out), np.asarray(ref),
                               rtol=2e-3, atol=2e-3)
    print("KERNEL_OK")
</pallas_src>

<mosaic_0001>
module attributes {stable_mosaic.version = 11 : i64} {
  func.func @encoder_layer_kernel(%arg0: i32, %arg1: memref<16x32xf32, #tpu.memory_space<vmem>>, %arg2: memref<32x96xf32, #tpu.memory_space<vmem>>, %arg3: memref<32x32xf32, #tpu.memory_space<vmem>>, %arg4: memref<32x64xf32, #tpu.memory_space<vmem>>, %arg5: memref<64x32xf32, #tpu.memory_space<vmem>>, %arg6: memref<8x128xf32, #tpu.memory_space<vmem>>, %arg7: memref<16x16xf32, #tpu.memory_space<vmem>>, %arg8: memref<16x32xf32, #tpu.memory_space<vmem>>) attributes {dimension_semantics = [#tpu.dimension_semantics<arbitrary>], iteration_bounds = array<i64: 1>, scalar_prefetch = 0 : i64, scratch_operands = 0 : i64, tpu.core_type = #tpu.core_type<tc>, window_params = [{pipeline_mode = #tpu.pipeline_mode<synchronous>, transform_indices = @transform_0, window_bounds = array<i64: 16, 32>}, {pipeline_mode = #tpu.pipeline_mode<synchronous>, transform_indices = @transform_1, window_bounds = array<i64: 32, 96>}, {pipeline_mode = #tpu.pipeline_mode<synchronous>, transform_indices = @transform_2, window_bounds = array<i64: 32, 32>}, {pipeline_mode = #tpu.pipeline_mode<synchronous>, transform_indices = @transform_3, window_bounds = array<i64: 32, 64>}, {pipeline_mode = #tpu.pipeline_mode<synchronous>, transform_indices = @transform_4, window_bounds = array<i64: 64, 32>}, {pipeline_mode = #tpu.pipeline_mode<synchronous>, transform_indices = @transform_5, window_bounds = array<i64: 8, 128>}, {pipeline_mode = #tpu.pipeline_mode<synchronous>, transform_indices = @transform_6, window_bounds = array<i64: 16, 16>}, {pipeline_mode = #tpu.pipeline_mode<synchronous>, transform_indices = @transform_7, window_bounds = array<i64: 16, 32>}]} {
    %c0 = arith.constant 0 : index
    %c0_0 = arith.constant 0 : index
    %0 = vector.load %arg1[%c0, %c0_0] : memref<16x32xf32, #tpu.memory_space<vmem>>, vector<16x32xf32>
    %c0_1 = arith.constant 0 : index
    %c0_2 = arith.constant 0 : index
    %1 = vector.load %arg6[%c0_1, %c0_2] : memref<8x128xf32, #tpu.memory_space<vmem>>, vector<8x128xf32>
    %2 = vector.extract_strided_slice %1 {offsets = [0, 0], sizes = [1, 96], strides = [1, 1]} : vector<8x128xf32> to vector<1x96xf32>
    %3 = vector.extract_strided_slice %1 {offsets = [1, 0], sizes = [1, 32], strides = [1, 1]} : vector<8x128xf32> to vector<1x32xf32>
    %4 = vector.extract_strided_slice %1 {offsets = [2, 0], sizes = [1, 64], strides = [1, 1]} : vector<8x128xf32> to vector<1x64xf32>
    %5 = vector.extract_strided_slice %1 {offsets = [3, 0], sizes = [1, 32], strides = [1, 1]} : vector<8x128xf32> to vector<1x32xf32>
    %6 = vector.extract_strided_slice %1 {offsets = [4, 0], sizes = [1, 32], strides = [1, 1]} : vector<8x128xf32> to vector<1x32xf32>
    %7 = vector.extract_strided_slice %1 {offsets = [5, 0], sizes = [1, 32], strides = [1, 1]} : vector<8x128xf32> to vector<1x32xf32>
    %8 = vector.extract_strided_slice %1 {offsets = [6, 0], sizes = [1, 32], strides = [1, 1]} : vector<8x128xf32> to vector<1x32xf32>
    %9 = vector.extract_strided_slice %1 {offsets = [7, 0], sizes = [1, 32], strides = [1, 1]} : vector<8x128xf32> to vector<1x32xf32>
    %c0_3 = arith.constant 0 : index
    %c0_4 = arith.constant 0 : index
    %10 = vector.load %arg2[%c0_3, %c0_4] : memref<32x96xf32, #tpu.memory_space<vmem>>, vector<32x96xf32>
    %cst = arith.constant dense<0.000000e+00> : vector<16x96xf32>
    %11 = tpu.matmul %0, %10, %cst {dimension_numbers = #tpu.dot_dimension_numbers<[1], [0], [0], [1], [0, 0, 1, 1], [], []>} : vector<16x32xf32>, vector<32x96xf32>, vector<16x96xf32> -> vector<16x96xf32>
    %12 = vector.broadcast %2 : vector<1x96xf32> to vector<16x96xf32>
    %13 = arith.addf %11, %12 : vector<16x96xf32>
    %c0_5 = arith.constant 0 : index
    %c0_6 = arith.constant 0 : index
    %14 = vector.load %arg7[%c0_5, %c0_6] : memref<16x16xf32, #tpu.memory_space<vmem>>, vector<16x16xf32>
    %15 = vector.extract_strided_slice %13 {offsets = [0, 0], sizes = [16, 8], strides = [1, 1]} : vector<16x96xf32> to vector<16x8xf32>
    %16 = vector.extract_strided_slice %13 {offsets = [0, 32], sizes = [16, 8], strides = [1, 1]} : vector<16x96xf32> to vector<16x8xf32>
    %17 = vector.extract_strided_slice %13 {offsets = [0, 64], sizes = [16, 8], strides = [1, 1]} : vector<16x96xf32> to vector<16x8xf32>
    %18 = tpu.transpose %16, [1, 0] : vector<16x8xf32> -> vector<8x16xf32>
    %cst_7 = arith.constant dense<0.000000e+00> : vector<16x16xf32>
    %19 = tpu.matmul %15, %18, %cst_7 {dimension_numbers = #tpu.dot_dimension_numbers<[1], [0], [0], [1], [0, 0, 1, 1], [], []>} : vector<16x8xf32>, vector<8x16xf32>, vector<16x16xf32> -> vector<16x16xf32>
    %cst_8 = arith.constant 0.353553385 : f32
    %20 = vector.broadcast %cst_8 : f32 to vector<16x16xf32>
    %21 = arith.mulf %19, %20 : vector<16x16xf32>
    %22 = arith.addf %21, %14 : vector<16x16xf32>
    %cst_9 = arith.constant dense<0xFF800000> : vector<16xf32>
    %23 = vector.multi_reduction <maximumf>, %22, %cst_9 [1] : vector<16x16xf32> to vector<16xf32>
    %24 = vector.shape_cast %23 : vector<16xf32> to vector<16x1xf32>
    %25 = vector.broadcast %24 : vector<16x1xf32> to vector<16x16xf32>
    %26 = arith.subf %22, %25 : vector<16x16xf32>
    %27 = math.exp %26 : vector<16x16xf32>
    %cst_10 = arith.constant dense<0.000000e+00> : vector<16xf32>
    %28 = vector.multi_reduction <add>, %27, %cst_10 [1] : vector<16x16xf32> to vector<16xf32>
    %29 = vector.shape_cast %28 : vector<16xf32> to vector<16x1xf32>
    %30 = tpu.reciprocal %29 {approx = true} : vector<16x1xf32> -> vector<16x1xf32>
    %31 = vector.broadcast %30 : vector<16x1xf32> to vector<16x16xf32>
    %32 = arith.mulf %27, %31 : vector<16x16xf32>
    %cst_11 = arith.constant dense<0.000000e+00> : vector<16x8xf32>
    %33 = tpu.matmul %32, %17, %cst_11 {dimension_numbers = #tpu.dot_dimension_numbers<[1], [0], [0], [1], [0, 0, 1, 1], [], []>} : vector<16x16xf32>, vector<16x8xf32>, vector<16x8xf32> -> vector<16x8xf32>
    %34 = vector.extract_strided_slice %13 {offsets = [0, 8], sizes = [16, 8], strides = [1, 1]} : vector<16x96xf32> to vector<16x8xf32>
    %35 = vector.extract_strided_slice %13 {offsets = [0, 40], sizes = [16, 8], strides = [1, 1]} : vector<16x96xf32> to vector<16x8xf32>
    %36 = vector.extract_strided_slice %13 {offsets = [0, 72], sizes = [16, 8], strides = [1, 1]} : vector<16x96xf32> to vector<16x8xf32>
    %37 = tpu.transpose %35, [1, 0] : vector<16x8xf32> -> vector<8x16xf32>
    %cst_12 = arith.constant dense<0.000000e+00> : vector<16x16xf32>
    %38 = tpu.matmul %34, %37, %cst_12 {dimension_numbers = #tpu.dot_dimension_numbers<[1], [0], [0], [1], [0, 0, 1, 1], [], []>} : vector<16x8xf32>, vector<8x16xf32>, vector<16x16xf32> -> vector<16x16xf32>
    %cst_13 = arith.constant 0.353553385 : f32
    %39 = vector.broadcast %cst_13 : f32 to vector<16x16xf32>
    %40 = arith.mulf %38, %39 : vector<16x16xf32>
    %41 = arith.addf %40, %14 : vector<16x16xf32>
    %cst_14 = arith.constant dense<0xFF800000> : vector<16xf32>
    %42 = vector.multi_reduction <maximumf>, %41, %cst_14 [1] : vector<16x16xf32> to vector<16xf32>
    %43 = vector.shape_cast %42 : vector<16xf32> to vector<16x1xf32>
    %44 = vector.broadcast %43 : vector<16x1xf32> to vector<16x16xf32>
    %45 = arith.subf %41, %44 : vector<16x16xf32>
    %46 = math.exp %45 : vector<16x16xf32>
    %cst_15 = arith.constant dense<0.000000e+00> : vector<16xf32>
    %47 = vector.multi_reduction <add>, %46, %cst_15 [1] : vector<16x16xf32> to vector<16xf32>
    %48 = vector.shape_cast %47 : vector<16xf32> to vector<16x1xf32>
    %49 = tpu.reciprocal %48 {approx = true} : vector<16x1xf32> -> vector<16x1xf32>
    %50 = vector.broadcast %49 : vector<16x1xf32> to vector<16x16xf32>
    %51 = arith.mulf %46, %50 : vector<16x16xf32>
    %cst_16 = arith.constant dense<0.000000e+00> : vector<16x8xf32>
    %52 = tpu.matmul %51, %36, %cst_16 {dimension_numbers = #tpu.dot_dimension_numbers<[1], [0], [0], [1], [0, 0, 1, 1], [], []>} : vector<16x16xf32>, vector<16x8xf32>, vector<16x8xf32> -> vector<16x8xf32>
    %53 = vector.extract_strided_slice %13 {offsets = [0, 16], sizes = [16, 8], strides = [1, 1]} : vector<16x96xf32> to vector<16x8xf32>
    %54 = vector.extract_strided_slice %13 {offsets = [0, 48], sizes = [16, 8], strides = [1, 1]} : vector<16x96xf32> to vector<16x8xf32>
    %55 = vector.extract_strided_slice %13 {offsets = [0, 80], sizes = [16, 8], strides = [1, 1]} : vector<16x96xf32> to vector<16x8xf32>
    %56 = tpu.transpose %54, [1, 0] : vector<16x8xf32> -> vector<8x16xf32>
    %cst_17 = arith.constant dense<0.000000e+00> : vector<16x16xf32>
    %57 = tpu.matmul %53, %56, %cst_17 {dimension_numbers = #tpu.dot_dimension_numbers<[1], [0], [0], [1], [0, 0, 1, 1], [], []>} : vector<16x8xf32>, vector<8x16xf32>, vector<16x16xf32> -> vector<16x16xf32>
    %cst_18 = arith.constant 0.353553385 : f32
    %58 = vector.broadcast %cst_18 : f32 to vector<16x16xf32>
    %59 = arith.mulf %57, %58 : vector<16x16xf32>
    %60 = arith.addf %59, %14 : vector<16x16xf32>
    %cst_19 = arith.constant dense<0xFF800000> : vector<16xf32>
    %61 = vector.multi_reduction <maximumf>, %60, %cst_19 [1] : vector<16x16xf32> to vector<16xf32>
    %62 = vector.shape_cast %61 : vector<16xf32> to vector<16x1xf32>
    %63 = vector.broadcast %62 : vector<16x1xf32> to vector<16x16xf32>
    %64 = arith.subf %60, %63 : vector<16x16xf32>
    %65 = math.exp %64 : vector<16x16xf32>
    %cst_20 = arith.constant dense<0.000000e+00> : vector<16xf32>
    %66 = vector.multi_reduction <add>, %65, %cst_20 [1] : vector<16x16xf32> to vector<16xf32>
    %67 = vector.shape_cast %66 : vector<16xf32> to vector<16x1xf32>
    %68 = tpu.reciprocal %67 {approx = true} : vector<16x1xf32> -> vector<16x1xf32>
    %69 = vector.broadcast %68 : vector<16x1xf32> to vector<16x16xf32>
    %70 = arith.mulf %65, %69 : vector<16x16xf32>
    %cst_21 = arith.constant dense<0.000000e+00> : vector<16x8xf32>
    %71 = tpu.matmul %70, %55, %cst_21 {dimension_numbers = #tpu.dot_dimension_numbers<[1], [0], [0], [1], [0, 0, 1, 1], [], []>} : vector<16x16xf32>, vector<16x8xf32>, vector<16x8xf32> -> vector<16x8xf32>
    %72 = vector.extract_strided_slice %13 {offsets = [0, 24], sizes = [16, 8], strides = [1, 1]} : vector<16x96xf32> to vector<16x8xf32>
    %73 = vector.extract_strided_slice %13 {offsets = [0, 56], sizes = [16, 8], strides = [1, 1]} : vector<16x96xf32> to vector<16x8xf32>
    %74 = vector.extract_strided_slice %13 {offsets = [0, 88], sizes = [16, 8], strides = [1, 1]} : vector<16x96xf32> to vector<16x8xf32>
    %75 = tpu.transpose %73, [1, 0] : vector<16x8xf32> -> vector<8x16xf32>
    %cst_22 = arith.constant dense<0.000000e+00> : vector<16x16xf32>
    %76 = tpu.matmul %72, %75, %cst_22 {dimension_numbers = #tpu.dot_dimension_numbers<[1], [0], [0], [1], [0, 0, 1, 1], [], []>} : vector<16x8xf32>, vector<8x16xf32>, vector<16x16xf32> -> vector<16x16xf32>
    %cst_23 = arith.constant 0.353553385 : f32
    %77 = vector.broadcast %cst_23 : f32 to vector<16x16xf32>
    %78 = arith.mulf %76, %77 : vector<16x16xf32>
    %79 = arith.addf %78, %14 : vector<16x16xf32>
    %cst_24 = arith.constant dense<0xFF800000> : vector<16xf32>
    %80 = vector.multi_reduction <maximumf>, %79, %cst_24 [1] : vector<16x16xf32> to vector<16xf32>
    %81 = vector.shape_cast %80 : vector<16xf32> to vector<16x1xf32>
    %82 = vector.broadcast %81 : vector<16x1xf32> to vector<16x16xf32>
    %83 = arith.subf %79, %82 : vector<16x16xf32>
    %84 = math.exp %83 : vector<16x16xf32>
    %cst_25 = arith.constant dense<0.000000e+00> : vector<16xf32>
    %85 = vector.multi_reduction <add>, %84, %cst_25 [1] : vector<16x16xf32> to vector<16xf32>
    %86 = vector.shape_cast %85 : vector<16xf32> to vector<16x1xf32>
    %87 = tpu.reciprocal %86 {approx = true} : vector<16x1xf32> -> vector<16x1xf32>
    %88 = vector.broadcast %87 : vector<16x1xf32> to vector<16x16xf32>
    %89 = arith.mulf %84, %88 : vector<16x16xf32>
    %cst_26 = arith.constant dense<0.000000e+00> : vector<16x8xf32>
    %90 = tpu.matmul %89, %74, %cst_26 {dimension_numbers = #tpu.dot_dimension_numbers<[1], [0], [0], [1], [0, 0, 1, 1], [], []>} : vector<16x16xf32>, vector<16x8xf32>, vector<16x8xf32> -> vector<16x8xf32>
    %91 = tpu.concatenate %33, %52, %71, %90 in 1 : vector<16x8xf32>, vector<16x8xf32>, vector<16x8xf32>, vector<16x8xf32> -> vector<16x32xf32>
    %c0_27 = arith.constant 0 : index
    %c0_28 = arith.constant 0 : index
    %92 = vector.load %arg3[%c0_27, %c0_28] : memref<32x32xf32, #tpu.memory_space<vmem>>, vector<32x32xf32>
    %cst_29 = arith.constant dense<0.000000e+00> : vector<16x32xf32>
    %93 = tpu.matmul %91, %92, %cst_29 {dimension_numbers = #tpu.dot_dimension_numbers<[1], [0], [0], [1], [0, 0, 1, 1], [], []>} : vector<16x32xf32>, vector<32x32xf32>, vector<16x32xf32> -> vector<16x32xf32>
    %94 = vector.broadcast %3 : vector<1x32xf32> to vector<16x32xf32>
    %95 = arith.addf %93, %94 : vector<16x32xf32>
    %96 = arith.addf %0, %95 : vector<16x32xf32>
    %cst_30 = arith.constant dense<0.000000e+00> : vector<16xf32>
    %97 = vector.multi_reduction <add>, %96, %cst_30 [1] : vector<16x32xf32> to vector<16xf32>
    %98 = vector.shape_cast %97 : vector<16xf32> to vector<16x1xf32>
    %cst_31 = arith.constant 3.200000e+01 : f32
    %99 = vector.broadcast %cst_31 : f32 to vector<16x1xf32>
    %100 = arith.divf %98, %99 : vector<16x1xf32>
    %101 = vector.broadcast %100 : vector<16x1xf32> to vector<16x32xf32>
    %102 = arith.subf %96, %101 : vector<16x32xf32>
    %103 = arith.mulf %102, %102 : vector<16x32xf32>
    %cst_32 = arith.constant dense<0.000000e+00> : vector<16xf32>
    %104 = vector.multi_reduction <add>, %103, %cst_32 [1] : vector<16x32xf32> to vector<16xf32>
    %105 = vector.shape_cast %104 : vector<16xf32> to vector<16x1xf32>
    %cst_33 = arith.constant 3.200000e+01 : f32
    %106 = vector.broadcast %cst_33 : f32 to vector<16x1xf32>
    %107 = arith.divf %105, %106 : vector<16x1xf32>
    %108 = vector.broadcast %100 : vector<16x1xf32> to vector<16x32xf32>
    %109 = arith.subf %96, %108 : vector<16x32xf32>
    %cst_34 = arith.constant 9.99999974E-6 : f32
    %110 = vector.broadcast %cst_34 : f32 to vector<16x1xf32>
    %111 = arith.addf %107, %110 : vector<16x1xf32>
    %112 = math.rsqrt %111 : vector<16x1xf32>
    %113 = vector.broadcast %112 : vector<16x1xf32> to vector<16x32xf32>
    %114 = arith.mulf %109, %113 : vector<16x32xf32>
    %115 = vector.broadcast %6 : vector<1x32xf32> to vector<16x32xf32>
    %116 = arith.mulf %114, %115 : vector<16x32xf32>
    %117 = vector.broadcast %7 : vector<1x32xf32> to vector<16x32xf32>
    %118 = arith.addf %116, %117 : vector<16x32xf32>
    %c0_35 = arith.constant 0 : index
    %c0_36 = arith.constant 0 : index
    %119 = vector.load %arg4[%c0_35, %c0_36] : memref<32x64xf32, #tpu.memory_space<vmem>>, vector<32x64xf32>
    %cst_37 = arith.constant dense<0.000000e+00> : vector<16x64xf32>
    %120 = tpu.matmul %118, %119, %cst_37 {dimension_numbers = #tpu.dot_dimension_numbers<[1], [0], [0], [1], [0, 0, 1, 1], [], []>} : vector<16x32xf32>, vector<32x64xf32>, vector<16x64xf32> -> vector<16x64xf32>
    %121 = vector.broadcast %4 : vector<1x64xf32> to vector<16x64xf32>
    %122 = arith.addf %120, %121 : vector<16x64xf32>
    %cst_38 = arith.constant 0.000000e+00 : f32
    %123 = vector.broadcast %cst_38 : f32 to vector<16x64xf32>
    %124 = arith.maximumf %122, %123 : vector<16x64xf32>
    %c0_39 = arith.constant 0 : index
    %c0_40 = arith.constant 0 : index
    %125 = vector.load %arg5[%c0_39, %c0_40] : memref<64x32xf32, #tpu.memory_space<vmem>>, vector<64x32xf32>
    %cst_41 = arith.constant dense<0.000000e+00> : vector<16x32xf32>
    %126 = tpu.matmul %124, %125, %cst_41 {dimension_numbers = #tpu.dot_dimension_numbers<[1], [0], [0], [1], [0, 0, 1, 1], [], []>} : vector<16x64xf32>, vector<64x32xf32>, vector<16x32xf32> -> vector<16x32xf32>
    %127 = vector.broadcast %5 : vector<1x32xf32> to vector<16x32xf32>
    %128 = arith.addf %126, %127 : vector<16x32xf32>
    %129 = arith.addf %118, %128 : vector<16x32xf32>
    %cst_42 = arith.constant dense<0.000000e+00> : vector<16xf32>
    %130 = vector.multi_reduction <add>, %129, %cst_42 [1] : vector<16x32xf32> to vector<16xf32>
    %131 = vector.shape_cast %130 : vector<16xf32> to vector<16x1xf32>
    %cst_43 = arith.constant 3.200000e+01 : f32
    %132 = vector.broadcast %cst_43 : f32 to vector<16x1xf32>
    %133 = arith.divf %131, %132 : vector<16x1xf32>
    %134 = vector.broadcast %133 : vector<16x1xf32> to vector<16x32xf32>
    %135 = arith.subf %129, %134 : vector<16x32xf32>
    %136 = arith.mulf %135, %135 : vector<16x32xf32>
    %cst_44 = arith.constant dense<0.000000e+00> : vector<16xf32>
    %137 = vector.multi_reduction <add>, %136, %cst_44 [1] : vector<16x32xf32> to vector<16xf32>
    %138 = vector.shape_cast %137 : vector<16xf32> to vector<16x1xf32>
    %cst_45 = arith.constant 3.200000e+01 : f32
    %139 = vector.broadcast %cst_45 : f32 to vector<16x1xf32>
    %140 = arith.divf %138, %139 : vector<16x1xf32>
    %141 = vector.broadcast %133 : vector<16x1xf32> to vector<16x32xf32>
    %142 = arith.subf %129, %141 : vector<16x32xf32>
    %cst_46 = arith.constant 9.99999974E-6 : f32
    %143 = vector.broadcast %cst_46 : f32 to vector<16x1xf32>
    %144 = arith.addf %140, %143 : vector<16x1xf32>
    %145 = math.rsqrt %144 : vector<16x1xf32>
    %146 = vector.broadcast %145 : vector<16x1xf32> to vector<16x32xf32>
    %147 = arith.mulf %142, %146 : vector<16x32xf32>
    %148 = vector.broadcast %8 : vector<1x32xf32> to vector<16x32xf32>
    %149 = arith.mulf %147, %148 : vector<16x32xf32>
    %150 = vector.broadcast %9 : vector<1x32xf32> to vector<16x32xf32>
    %151 = arith.addf %149, %150 : vector<16x32xf32>
    %c0_47 = arith.constant 0 : index
    %c0_48 = arith.constant 0 : index
    %152 = vector.load %arg8[%c0_47, %c0_48] : memref<16x32xf32, #tpu.memory_space<vmem>>, vector<16x32xf32>
    tpu.vector_store %arg8[%c0_47, %c0_48], %151 {strides = array<i32>} : memref<16x32xf32, #tpu.memory_space<vmem>>, vector<16x32xf32>,
    return
  }
  func.func @transform_0(%arg0: i32) -> (i32, i32) {
    %c0_i32 = arith.constant 0 : i32
    %c0_i32_0 = arith.constant 0 : i32
    %c0_i32_1 = arith.constant 0 : i32
    return %c0_i32, %c0_i32_0 : i32, i32
  }
  func.func @transform_1(%arg0: i32) -> (i32, i32) {
    %c0_i32 = arith.constant 0 : i32
    %c0_i32_0 = arith.constant 0 : i32
    %c0_i32_1 = arith.constant 0 : i32
    return %c0_i32, %c0_i32_0 : i32, i32
  }
  func.func @transform_2(%arg0: i32) -> (i32, i32) {
    %c0_i32 = arith.constant 0 : i32
    %c0_i32_0 = arith.constant 0 : i32
    %c0_i32_1 = arith.constant 0 : i32
    return %c0_i32, %c0_i32_0 : i32, i32
  }
  func.func @transform_3(%arg0: i32) -> (i32, i32) {
    %c0_i32 = arith.constant 0 : i32
    %c0_i32_0 = arith.constant 0 : i32
    %c0_i32_1 = arith.constant 0 : i32
    return %c0_i32, %c0_i32_0 : i32, i32
  }
  func.func @transform_4(%arg0: i32) -> (i32, i32) {
    %c0_i32 = arith.constant 0 : i32
    %c0_i32_0 = arith.constant 0 : i32
    %c0_i32_1 = arith.constant 0 : i32
    return %c0_i32, %c0_i32_0 : i32, i32
  }
  func.func @transform_5(%arg0: i32) -> (i32, i32) {
    %c0_i32 = arith.constant 0 : i32
    %c0_i32_0 = arith.constant 0 : i32
    %c0_i32_1 = arith.constant 0 : i32
    return %c0_i32, %c0_i32_0 : i32, i32
  }
  func.func @transform_6(%arg0: i32) -> (i32, i32) {
    %c0_i32 = arith.constant 0 : i32
    %c0_i32_0 = arith.constant 0 : i32
    %c0_i32_1 = arith.constant 0 : i32
    return %c0_i32, %c0_i32_0 : i32, i32
  }
  func.func @transform_7(%arg0: i32) -> (i32, i32) {
    %c0_i32 = arith.constant 0 : i32
    %c0_i32_0 = arith.constant 0 : i32
    %c0_i32_1 = arith.constant 0 : i32
    return %c0_i32, %c0_i32_0 : i32, i32
  }
}

</mosaic_0001>

<llo_original>
// kernel: tpu_custom_call.1
$region0: #{tpu_custom_call.1}
  #allocation0 [shape = 'u32[]', space=smem, size = 0x4, offset = 0x4, fixed_abs, tag = 'smem constant byte address 0x4 - core index']
  #allocation1 [shape = 'u32[144,128]{1,0:T(1,128)}', space=vmem, size = 0x12000, scoped, tag = 'internal scratch']
  %s0 = inlined_call_operand.hbm [shape: f32[16,32], index: 0, kind: input, shape index: {}]
  %s1 = inlined_call_operand.vmem [shape: f32[32,96], index: 1, kind: input, shape index: {}]
  %s2 = inlined_call_operand.vmem [shape: f32[32,32], index: 2, kind: input, shape index: {}]
  %s3 = inlined_call_operand.vmem [shape: f32[32,64], index: 3, kind: input, shape index: {}]
  %s4 = inlined_call_operand.vmem [shape: f32[64,32], index: 4, kind: input, shape index: {}]
  %s5 = inlined_call_operand.hbm [shape: f32[8,128], index: 5, kind: input, shape index: {}]
  %s6 = inlined_call_operand.vmem [shape: f32[16,16], index: 6, kind: input, shape index: {}]
  %s7 = inlined_call_operand.hbm [shape: f32[16,32], index: 7, kind: output, shape index: {}]
  %s8 = sld [smem:[#allocation0]]
  $region46: #{tpu_custom_call.1} parent=0
    _
  %s10 = ssub.s32 1, %s8
  %s11 = scalar_select 0, %s10, %s8
  $region1: #{tpu_custom_call.1} parent=0
    #allocation2 [shape = 'u8[8192]{0}', space=vmem, size = 0x2000, scoped, tag = 'input window, operand 0, single buffered']
    #allocation3 [shape = 's32[1]{0}', space=sflag, size = 0x4, scoped, tag = 'scoped memory for tpu_custom_call.1']
    #allocation4 [shape = 's32[1]{0}', space=sflag, size = 0x4, scoped, tag = 'scoped memory for tpu_custom_call.1']
    #allocation5 [shape = 'u8[4096]{0}', space=vmem, size = 0x1000, scoped, tag = 'input window, operand 5, single buffered']
    #allocation6 [shape = 's32[1]{0}', space=sflag, size = 0x4, scoped, tag = 'scoped memory for tpu_custom_call.1']
    #allocation7 [shape = 'u8[8192]{0}', space=vmem, size = 0x2000, scoped, tag = 'output window, operand 0, single buffered']
    %12 = vsyncpa [#allocation3], 0
    %13 = vsyncpa [#allocation6], 0
    %14 = vsyncpa [#allocation4], 0
    // Predicated region
    $region2: #{tpu_custom_call.1} parent=1 // pred_check
      _
    $region3: #{tpu_custom_call.1} parent=1 // pred_check_branch
      %16 = sbr.rel (0) target = $region5
    $region4: #{tpu_custom_call.1} parent=1 // pred_region
      %s18 = ssub.s32 256, 256
      %19 = vsyncadd [#allocation3], %s18
      %s20 = sshll.u32 [#allocation2], 4
      %s21 = int_to_ptr.vmem [resolvable:$true] %s20
      %26 = dma.hbm_to_vmem [thread:$0]  %s0, 256, %s21, [#allocation3], 128, 128, 8
    $region5: #{tpu_custom_call.1} parent=1 // pred_fallthru
      _
    // Predicated region
    $region6: #{tpu_custom_call.1} parent=1 // pred_check
      _
    $region7: #{tpu_custom_call.1} parent=1 // pred_check_branch
      %28 = sbr.rel (0) target = $region9
    $region8: #{tpu_custom_call.1} parent=1 // pred_region
      _
    $region9: #{tpu_custom_call.1} parent=1 // pred_fallthru
      _
    // Predicated region
    $region10: #{tpu_custom_call.1} parent=1 // pred_check
      _
    $region11: #{tpu_custom_call.1} parent=1 // pred_check_branch
      %30 = sbr.rel (0) target = $region13
    $region12: #{tpu_custom_call.1} parent=1 // pred_region
      _
    $region13: #{tpu_custom_call.1} parent=1 // pred_fallthru
      _
    // Predicated region
    $region14: #{tpu_custom_call.1} parent=1 // pred_check
      _
    $region15: #{tpu_custom_call.1} parent=1 // pred_check_branch
      %32 = sbr.rel (0) target = $region17
    $region16: #{tpu_custom_call.1} parent=1 // pred_region
      _
    $region17: #{tpu_custom_call.1} parent=1 // pred_fallthru
      _
    // Predicated region
    $region18: #{tpu_custom_call.1} parent=1 // pred_check
      _
    $region19: #{tpu_custom_call.1} parent=1 // pred_check_branch
      %34 = sbr.rel (0) target = $region21
    $region20: #{tpu_custom_call.1} parent=1 // pred_region
      _
    $region21: #{tpu_custom_call.1} parent=1 // pred_fallthru
      _
    // Predicated region
    $region22: #{tpu_custom_call.1} parent=1 // pred_check
      _
    $region23: #{tpu_custom_call.1} parent=1 // pred_check_branch
      %36 = sbr.rel (0) target = $region25
    $region24: #{tpu_custom_call.1} parent=1 // pred_region
      %s38 = ssub.s32 128, 128
      %39 = vsyncadd [#allocation6], %s38
      %s41 = sshll.u32 [#allocation5], 4
      %s42 = int_to_ptr.vmem [resolvable:$true] %s41
      %44 = dma.hbm_to_vmem [thread:$0]  %s5, 128, %s42, [#allocation6]
    $region25: #{tpu_custom_call.1} parent=1 // pred_fallthru
      _
    // Predicated region
    $region26: #{tpu_custom_call.1} parent=1 // pred_check
      _
    $region27: #{tpu_custom_call.1} parent=1 // pred_check_branch
      %46 = sbr.rel (0) target = $region29
    $region28: #{tpu_custom_call.1} parent=1 // pred_region
      _
    $region29: #{tpu_custom_call.1} parent=1 // pred_fallthru
      _
    // Predicated region
    $region30: #{tpu_custom_call.1} parent=1 // pred_check
      _
    $region31: #{tpu_custom_call.1} parent=1 // pred_check_branch
      %48 = sbr.rel (0) target = $region33
    $region32: #{tpu_custom_call.1} parent=1 // pred_region
      %49 = dma.done [#allocation3], 256
    $region33: #{tpu_custom_call.1} parent=1 // pred_fallthru
      _
    // Predicated region
    $region34: #{tpu_custom_call.1} parent=1 // pred_check
      _
    $region35: #{tpu_custom_call.1} parent=1 // pred_check_branch
      %51 = sbr.rel (0) target = $region37
    $region36: #{tpu_custom_call.1} parent=1 // pred_region
      %52 = dma.done [#allocation6], 128
    $region37: #{tpu_custom_call.1} parent=1 // pred_fallthru
      _
    %v53 = vld [vmem:[#allocation2] sm:$0xff]
    %v54 = vld [vmem:[#allocation2 + $0x8] sm:$0xff]
    %v55 = vld [vmem:[#allocation5] sm:$0xff]
    %v56 = vld [vmem:[%s1] sm:$0xff]
    %v57 = vld [vmem:[%s1 + $0x8] sm:$0xff]
    %v58 = vld [vmem:[%s1 + $0x10] sm:$0xff]
    %v59 = vld [vmem:[%s1 + $0x18] sm:$0xff]
    %v60 = vlaneseq
    %v61 = vshrl.u32 %v60, 7
    %v62 = vsub.s32 0, %v61
    %v63 = vrot.slane %v55, %v62
    %vm64 = vcmask 261120
    %v66 = vsel %vm64, %v53, 0
    %v69 = vsel %vm64, %v54, 0
    %71 = vmatprep.subr.mxu0 0.0
    %72 = vmatpush1.msra.mxu0 %v56
    %73 = vmatprep.subr.mxu0 0.0
    %74 = vmatpush1.msra.mxu0 %v57
    %75 = vmatprep.subr.mxu0 0.0
    %76 = vmatpush1.msra.mxu0 %v58
    %77 = vmatprep.subr.mxu0 0.0
    %78 = vmatpush1.msra.mxu0 %v59
    %79 = vmatprep.subr.mxu0 0.0
    %80 = vmatpush1.msra.mxu0 0.0
    %81 = vmatprep.subr.mxu0 0.0
    %82 = vmatpush1.msra.mxu0 0.0
    %83 = vmatprep.subr.mxu0 0.0
    %84 = vmatpush1.msra.mxu0 0.0
    %85 = vmatprep.subr.mxu0 0.0
    %86 = vmatpush1.msra.mxu0 0.0
    %87 = vmatprep.subr.mxu0 0.0
    %88 = vmatpush1.msra.mxu0 0.0
    %89 = vmatprep.subr.mxu0 0.0
    %90 = vmatpush1.msra.mxu0 0.0
    %91 = vmatprep.subr.mxu0 0.0
    %92 = vmatpush1.msra.mxu0 0.0
    %93 = vmatprep.subr.mxu0 0.0
    %94 = vmatpush1.msra.mxu0 0.0
    %95 = vmatprep.subr.mxu0 0.0
    %96 = vmatpush1.msra.mxu0 0.0
    %97 = vmatprep.subr.mxu0 0.0
    %98 = vmatpush1.msra.mxu0 0.0
    %99 = vmatprep.subr.mxu0 0.0
    %100 = vmatpush1.msra.mxu0 0.0
    %101 = vmatprep.subr.mxu0 0.0
    %102 = vmatpush1.msra.mxu0 0.0
    %103 = vmatprep.subr.mxu0 0.0
    %104 = vmatpush1.msra.mxu0 0.0
    %105 = vmatprep.subr.mxu0 0.0
    %106 = vmatpush1.msra.mxu0 0.0
    %107 = vmatprep.subr.mxu0 0.0
    %108 = vmatpush1.msra.mxu0 0.0
    %109 = vmatprep.subr.mxu0 0.0
    %110 = vmatpush1.msra.mxu0 0.0
    %111 = vmatprep.subr.mxu0 0.0
    %112 = vmatpush1.msra.mxu0 0.0
    %113 = vmatprep.subr.mxu0 0.0
    %114 = vmatpush1.msra.mxu0 0.0
    %115 = vmatprep.subr.mxu0 0.0
    %116 = vmatpush1.msra.mxu0 0.0
    %117 = vmatprep.subr.mxu0 0.0
    %118 = vmatpush1.msra.mxu0 0.0
    %119 = vmatprep.subr.mxu0 0.0
    %120 = vmatpush1.msra.mxu0 0.0
    %121 = vmatprep.subr.mxu0 0.0
    %122 = vmatpush1.msra.mxu0 0.0
    %123 = vmatprep.subr.mxu0 0.0
    %124 = vmatpush1.msra.mxu0 0.0
    %125 = vmatprep.subr.mxu0 0.0
    %126 = vmatpush1.msra.mxu0 0.0
    %127 = vmatprep.subr.mxu0 0.0
    %128 = vmatpush1.msra.mxu0 0.0
    %129 = vmatprep.subr.mxu0 0.0
    %130 = vmatpush1.msra.mxu0 0.0
    %131 = vmatprep.subr.mxu0 0.0
    %132 = vmatpush1.msra.mxu0 0.0
    %133 = vmatprep.subr.mxu0 0.0
    %134 = vmatpush1.msra.mxu0 0.0
    %135 = vmatprep.mubr.f32.mxu0 0.0
    %136 = vmatmul.mubr.f32.gmra.mrb[0].mxu0 %v66
    %v137 = vpop.f32.mrb[0].mxu0
    %v138 = vadd.f32 %v63, %v137
    %v139 = vpop.f32.mrb[0].mxu0
    %140 = vmatprep.mubr.f32.mxu0 0.0
    %141 = vmatmul.mubr.f32.gmra.mrb[0].mxu0 %v69
    %v142 = vpop.f32.mrb[0].mxu0
    %v143 = vadd.f32 %v63, %v142
    %v144 = vpop.f32.mrb[0].mxu0
    %145 = vdwg.mxu0
    %v146 = vld [vmem:[%s6] sm:$0xff]
    %v147 = vld [vmem:[%s6 + $0x8] sm:$0xff]
    %150 = vrot.lane.b32.xlu0 %v138, 96
    %v151 = vpop.permute.xlu0 %150
    %152 = vrot.lane.b32.xlu0 %v143, 96
    %v153 = vpop.permute.xlu0 %152
    %vm154 = vcmask 64512
    %v155 = vsel %vm154, %v138, 0
    %v157 = vsel %vm154, %v143, 0
    %v159 = vsel %vm154, %v151, 0
    %v161 = vsel %vm154, %v153, 0
    %163 = vmatprep.subr.mxu0 0.0
    %164 = vmatpush1.xpose.msra.mxu0 %v159
    %165 = vmatprep.subr.mxu0 0.0
    %166 = vmatpush1.xpose.msra.mxu0 %v161
    %167 = vmatprep.subr.mxu0 0.0
    %168 = vmatpush1.xpose.msra.mxu0 0.0
    %169 = vmatprep.subr.mxu0 0.0
    %170 = vmatpush1.xpose.msra.mxu0 0.0
    %171 = vmatprep.subr.mxu0 0.0
    %172 = vmatpush1.xpose.msra.mxu0 0.0
    %173 = vmatprep.subr.mxu0 0.0
    %174 = vmatpush1.xpose.msra.mxu0 0.0
    %175 = vmatprep.subr.mxu0 0.0
    %176 = vmatpush1.xpose.msra.mxu0 0.0
    %177 = vmatprep.subr.mxu0 0.0
    %178 = vmatpush1.xpose.msra.mxu0 0.0
    %179 = vmatprep.subr.mxu0 0.0
    %180 = vmatpush1.xpose.msra.mxu0 0.0
    %181 = vmatprep.subr.mxu0 0.0
    %182 = vmatpush1.xpose.msra.mxu0 0.0
    %183 = vmatprep.subr.mxu0 0.0
    %184 = vmatpush1.xpose.msra.mxu0 0.0
    %185 = vmatprep.subr.mxu0 0.0
    %186 = vmatpush1.xpose.msra.mxu0 0.0
    %187 = vmatprep.subr.mxu0 0.0
    %188 = vmatpush1.xpose.msra.mxu0 0.0
    %189 = vmatprep.subr.mxu0 0.0
    %190 = vmatpush1.xpose.msra.mxu0 0.0
    %191 = vmatprep.subr.mxu0 0.0
    %192 = vmatpush1.xpose.msra.mxu0 0.0
    %193 = vmatprep.subr.mxu0 0.0
    %194 = vmatpush1.xpose.msra.mxu0 0.0
    %195 = vmatprep.subr.mxu0 0.0
    %196 = vmatpush1.xpose.msra.mxu0 0.0
    %197 = vmatprep.subr.mxu0 0.0
    %198 = vmatpush1.xpose.msra.mxu0 0.0
    %199 = vmatprep.subr.mxu0 0.0
    %200 = vmatpush1.xpose.msra.mxu0 0.0
    %201 = vmatprep.subr.mxu0 0.0
    %202 = vmatpush1.xpose.msra.mxu0 0.0
    %203 = vmatprep.subr.mxu0 0.0
    %204 = vmatpush1.xpose.msra.mxu0 0.0
    %205 = vmatprep.subr.mxu0 0.0
    %206 = vmatpush1.xpose.msra.mxu0 0.0
    %207 = vmatprep.subr.mxu0 0.0
    %208 = vmatpush1.xpose.msra.mxu0 0.0
    %209 = vmatprep.subr.mxu0 0.0
    %210 = vmatpush1.xpose.msra.mxu0 0.0
    %211 = vmatprep.subr.mxu0 0.0
    %212 = vmatpush1.xpose.msra.mxu0 0.0
    %213 = vmatprep.subr.mxu0 0.0
    %214 = vmatpush1.xpose.msra.mxu0 0.0
    %215 = vmatprep.subr.mxu0 0.0
    %216 = vmatpush1.xpose.msra.mxu0 0.0
    %217 = vmatprep.subr.mxu0 0.0
    %218 = vmatpush1.xpose.msra.mxu0 0.0
    %219 = vmatprep.subr.mxu0 0.0
    %220 = vmatpush1.xpose.msra.mxu0 0.0
    %221 = vmatprep.subr.mxu0 0.0
    %222 = vmatpush1.xpose.msra.mxu0 0.0
    %223 = vmatprep.subr.mxu0 0.0
    %224 = vmatpush1.xpose.msra.mxu0 0.0
    %225 = vmatprep.subr.mxu0 0.0
    %226 = vmatpush1.xpose.msra.mxu0 0.0
    %227 = vmatprep.mubr.f32.mxu0 0.0
    %228 = vmatmul.mubr.f32.gmra.mrb[0].mxu0 %v155
    %v229 = vpop.f32.mrb[0].mxu0
    %v230 = vadd.f32 0.0, %v229
    %v231 = vpop.f32.mrb[0].mxu0
    %232 = vmatprep.mubr.f32.mxu0 0.0
    %233 = vmatmul.mubr.f32.gmra.mrb[0].mxu0 %v157
    %v234 = vpop.f32.mrb[0].mxu0
    %v235 = vadd.f32 0.0, %v234
    %v236 = vpop.f32.mrb[0].mxu0
    %237 = vdwg.mxu0
    %v238 = vmul.f32 %v230, 0.35355338
    %v239 = vmul.f32 %v235, 0.35355338
    %v240 = vadd.f32 %v238, %v146
    %v241 = vadd.f32 %v239, %v147
    %vm242 = vcmask 130048
    %v243 = vsel %vm242, %v240, -inf
    %244 = vmax.xlane.f32.xlu0 %v243
    %v245 = vpop.xlane.xlu0 %244
    %v246 = vsel %vm242, %v241, -inf
    %247 = vmax.xlane.f32.xlu0 %v246
    %v248 = vpop.xlane.xlu0 %247
    %v249 = vsub.f32 %v240, %v245
    %v250 = vsub.f32 %v241, %v248
    %v251 = vmul.f32 %v249, 1.442695
    %v252 = vpow.pop %v251
    %v253 = vmul.f32 %v250, 1.442695
    %v254 = vpow.pop %v253
    %v255 = vsel %vm242, %v252, 0.0
    %256 = vadd.xlane.f32.xlu0 %v255
    %v257 = vpop.xlane.xlu0 %256
    %v258 = vsel %vm242, %v254, 0.0
    %259 = vadd.xlane.f32.xlu0 %v258
    %v260 = vpop.xlane.xlu0 %259
    %v261 = vrcp.pop %v257
    %v262 = vrcp.pop %v260
    %v263 = vmul.f32 %v252, %v261
    %v264 = vmul.f32 %v254, %v262
    %265 = vrot.lane.b32.xlu0 %v138, 64
    %v266 = vpop.permute.xlu0 %265
    %267 = vrot.lane.b32.xlu0 %v143, 64
    %v268 = vpop.permute.xlu0 %267
    %v272 = vsel %vm242, %v263, 0
    %v275 = vsel %vm242, %v264, 0
    %277 = vmatprep.subr.mxu0 0.0
    %278 = vmatpush1.msra.mxu0 %v266
    %279 = vmatprep.subr.mxu0 0.0
    %280 = vmatpush1.msra.mxu0 %v268
    %281 = vmatprep.subr.mxu0 0.0
    %282 = vmatpush1.msra.mxu0 0.0
    %283 = vmatprep.subr.mxu0 0.0
    %284 = vmatpush1.msra.mxu0 0.0
    %285 = vmatprep.subr.mxu0 0.0
    %286 = vmatpush1.msra.mxu0 0.0
    %287 = vmatprep.subr.mxu0 0.0
    %288 = vmatpush1.msra.mxu0 0.0
    %289 = vmatprep.subr.mxu0 0.0
    %290 = vmatpush1.msra.mxu0 0.0
    %291 = vmatprep.subr.mxu0 0.0
    %292 = vmatpush1.msra.mxu0 0.0
    %293 = vmatprep.subr.mxu0 0.0
    %294 = vmatpush1.msra.mxu0 0.0
    %295 = vmatprep.subr.mxu0 0.0
    %296 = vmatpush1.msra.mxu0 0.0
    %297 = vmatprep.subr.mxu0 0.0
    %298 = vmatpush1.msra.mxu0 0.0
    %299 = vmatprep.subr.mxu0 0.0
    %300 = vmatpush1.msra.mxu0 0.0
    %301 = vmatprep.subr.mxu0 0.0
    %302 = vmatpush1.msra.mxu0 0.0
    %303 = vmatprep.subr.mxu0 0.0
    %304 = vmatpush1.msra.mxu0 0.0
    %305 = vmatprep.subr.mxu0 0.0
    %306 = vmatpush1.msra.mxu0 0.0
    %307 = vmatprep.subr.mxu0 0.0
    %308 = vmatpush1.msra.mxu0 0.0
    %309 = vmatprep.subr.mxu0 0.0
    %310 = vmatpush1.msra.mxu0 0.0
    %311 = vmatprep.subr.mxu0 0.0
    %312 = vmatpush1.msra.mxu0 0.0
    %313 = vmatprep.subr.mxu0 0.0
    %314 = vmatpush1.msra.mxu0 0.0
    %315 = vmatprep.subr.mxu0 0.0
    %316 = vmatpush1.msra.mxu0 0.0
    %317 = vmatprep.subr.mxu0 0.0
    %318 = vmatpush1.msra.mxu0 0.0
    %319 = vmatprep.subr.mxu0 0.0
    %320 = vmatpush1.msra.mxu0 0.0
    %321 = vmatprep.subr.mxu0 0.0
    %322 = vmatpush1.msra.mxu0 0.0
    %323 = vmatprep.subr.mxu0 0.0
    %324 = vmatpush1.msra.mxu0 0.0
    %325 = vmatprep.subr.mxu0 0.0
    %326 = vmatpush1.msra.mxu0 0.0
    %327 = vmatprep.subr.mxu0 0.0
    %328 = vmatpush1.msra.mxu0 0.0
    %329 = vmatprep.subr.mxu0 0.0
    %330 = vmatpush1.msra.mxu0 0.0
    %331 = vmatprep.subr.mxu0 0.0
    %332 = vmatpush1.msra.mxu0 0.0
    %333 = vmatprep.subr.mxu0 0.0
    %334 = vmatpush1.msra.mxu0 0.0
    %335 = vmatprep.subr.mxu0 0.0
    %336 = vmatpush1.msra.mxu0 0.0
    %337 = vmatprep.subr.mxu0 0.0
    %338 = vmatpush1.msra.mxu0 0.0
    %339 = vmatprep.subr.mxu0 0.0
    %340 = vmatpush1.msra.mxu0 0.0
    %341 = vmatprep.mubr.f32.mxu0 0.0
    %342 = vmatmul.mubr.f32.gmra.mrb[0].mxu0 %v272
    %v343 = vpop.f32.mrb[0].mxu0
    %v344 = vadd.f32 0.0, %v343
    %v345 = vpop.f32.mrb[0].mxu0
    %346 = vmatprep.mubr.f32.mxu0 0.0
    %347 = vmatmul.mubr.f32.gmra.mrb[0].mxu0 %v275
    %v348 = vpop.f32.mrb[0].mxu0
    %v349 = vadd.f32 0.0, %v348
    %v350 = vpop.f32.mrb[0].mxu0
    %351 = vdwg.mxu0
    %352 = vrot.lane.b32.xlu0 %v138, 120
    %v353 = vpop.permute.xlu0 %352
    %354 = vrot.lane.b32.xlu0 %v143, 120
    %v355 = vpop.permute.xlu0 %354
    %356 = vrot.lane.b32.xlu0 %v138, 88
    %v357 = vpop.permute.xlu0 %356
    %358 = vrot.lane.b32.xlu0 %v143, 88
    %v359 = vpop.permute.xlu0 %358
    %v360 = vsel %vm154, %v353, 0
    %v362 = vsel %vm154, %v355, 0
    %v364 = vsel %vm154, %v357, 0
    %v366 = vsel %vm154, %v359, 0
    %368 = vmatprep.subr.mxu0 0.0
    %369 = vmatpush1.xpose.msra.mxu0 %v364
    %370 = vmatprep.subr.mxu0 0.0
    %371 = vmatpush1.xpose.msra.mxu0 %v366
    %372 = vmatprep.subr.mxu0 0.0
    %373 = vmatpush1.xpose.msra.mxu0 0.0
    %374 = vmatprep.subr.mxu0 0.0
    %375 = vmatpush1.xpose.msra.mxu0 0.0
    %376 = vmatprep.subr.mxu0 0.0
    %377 = vmatpush1.xpose.msra.mxu0 0.0
    %378 = vmatprep.subr.mxu0 0.0
    %379 = vmatpush1.xpose.msra.mxu0 0.0
    %380 = vmatprep.subr.mxu0 0.0
    %381 = vmatpush1.xpose.msra.mxu0 0.0
    %382 = vmatprep.subr.mxu0 0.0
    %383 = vmatpush1.xpose.msra.mxu0 0.0
    %384 = vmatprep.subr.mxu0 0.0
    %385 = vmatpush1.xpose.msra.mxu0 0.0
    %386 = vmatprep.subr.mxu0 0.0
    %387 = vmatpush1.xpose.msra.mxu0 0.0
    %388 = vmatprep.subr.mxu0 0.0
    %389 = vmatpush1.xpose.msra.mxu0 0.0
    %390 = vmatprep.subr.mxu0 0.0
    %391 = vmatpush1.xpose.msra.mxu0 0.0
    %392 = vmatprep.subr.mxu0 0.0
    %393 = vmatpush1.xpose.msra.mxu0 0.0
    %394 = vmatprep.subr.mxu0 0.0
    %395 = vmatpush1.xpose.msra.mxu0 0.0
    %396 = vmatprep.subr.mxu0 0.0
    %397 = vmatpush1.xpose.msra.mxu0 0.0
    %398 = vmatprep.subr.mxu0 0.0
    %399 = vmatpush1.xpose.msra.mxu0 0.0
    %400 = vmatprep.subr.mxu0 0.0
    %401 = vmatpush1.xpose.msra.mxu0 0.0
    %402 = vmatprep.subr.mxu0 0.0
    %403 = vmatpush1.xpose.msra.mxu0 0.0
    %404 = vmatprep.subr.mxu0 0.0
    %405 = vmatpush1.xpose.msra.mxu0 0.0
    %406 = vmatprep.subr.mxu0 0.0
    %407 = vmatpush1.xpose.msra.mxu0 0.0
    %408 = vmatprep.subr.mxu0 0.0
    %409 = vmatpush1.xpose.msra.mxu0 0.0
    %410 = vmatprep.subr.mxu0 0.0
    %411 = vmatpush1.xpose.msra.mxu0 0.0
    %412 = vmatprep.subr.mxu0 0.0
    %413 = vmatpush1.xpose.msra.mxu0 0.0
    %414 = vmatprep.subr.mxu0 0.0
    %415 = vmatpush1.xpose.msra.mxu0 0.0
    %416 = vmatprep.subr.mxu0 0.0
    %417 = vmatpush1.xpose.msra.mxu0 0.0
    %418 = vmatprep.subr.mxu0 0.0
    %419 = vmatpush1.xpose.msra.mxu0 0.0
    %420 = vmatprep.subr.mxu0 0.0
    %421 = vmatpush1.xpose.msra.mxu0 0.0
    %422 = vmatprep.subr.mxu0 0.0
    %423 = vmatpush1.xpose.msra.mxu0 0.0
    %424 = vmatprep.subr.mxu0 0.0
    %425 = vmatpush1.xpose.msra.mxu0 0.0
    %426 = vmatprep.subr.mxu0 0.0
    %427 = vmatpush1.xpose.msra.mxu0 0.0
    %428 = vmatprep.subr.mxu0 0.0
    %429 = vmatpush1.xpose.msra.mxu0 0.0
    %430 = vmatprep.subr.mxu0 0.0
    %431 = vmatpush1.xpose.msra.mxu0 0.0
    %432 = vmatprep.mubr.f32.mxu0 0.0
    %433 = vmatmul.mubr.f32.gmra.mrb[0].mxu0 %v360
    %v434 = vpop.f32.mrb[0].mxu0
    %v435 = vadd.f32 0.0, %v434
    %v436 = vpop.f32.mrb[0].mxu0
    %437 = vmatprep.mubr.f32.mxu0 0.0
    %438 = vmatmul.mubr.f32.gmra.mrb[0].mxu0 %v362
    %v439 = vpop.f32.mrb[0].mxu0
    %v440 = vadd.f32 0.0, %v439
    %v441 = vpop.f32.mrb[0].mxu0
    %442 = vdwg.mxu0
    %v443 = vmul.f32 %v435, 0.35355338
    %v444 = vmul.f32 %v440, 0.35355338
    %v445 = vadd.f32 %v443, %v146
    %v446 = vadd.f32 %v444, %v147
    %v447 = vsel %vm242, %v445, -inf
    %448 = vmax.xlane.f32.xlu0 %v447
    %v449 = vpop.xlane.xlu0 %448
    %v450 = vsel %vm242, %v446, -inf
    %451 = vmax.xlane.f32.xlu0 %v450
    %v452 = vpop.xlane.xlu0 %451
    %v453 = vsub.f32 %v445, %v449
    %v454 = vsub.f32 %v446, %v452
    %v455 = vmul.f32 %v453, 1.442695
    %v456 = vpow.pop %v455
    %v457 = vmul.f32 %v454, 1.442695
    %v458 = vpow.pop %v457
    %v459 = vsel %vm242, %v456, 0.0
    %460 = vadd.xlane.f32.xlu0 %v459
    %v461 = vpop.xlane.xlu0 %460
    %v462 = vsel %vm242, %v458, 0.0
    %463 = vadd.xlane.f32.xlu0 %v462
    %v464 = vpop.xlane.xlu0 %463
    %v465 = vrcp.pop %v461
    %v466 = vrcp.pop %v464
    %v467 = vmul.f32 %v456, %v465
    %v468 = vmul.f32 %v458, %v466
    %469 = vrot.lane.b32.xlu0 %v138, 56
    %v470 = vpop.permute.xlu0 %469
    %471 = vrot.lane.b32.xlu0 %v143, 56
    %v472 = vpop.permute.xlu0 %471
    %v476 = vsel %vm242, %v467, 0
    %v479 = vsel %vm242, %v468, 0
    %481 = vmatprep.subr.mxu0 0.0
    %482 = vmatpush1.msra.mxu0 %v470
    %483 = vmatprep.subr.mxu0 0.0
    %484 = vmatpush1.msra.mxu0 %v472
    %485 = vmatprep.subr.mxu0 0.0
    %486 = vmatpush1.msra.mxu0 0.0
    %487 = vmatprep.subr.mxu0 0.0
    %488 = vmatpush1.msra.mxu0 0.0
    %489 = vmatprep.subr.mxu0 0.0
    %490 = vmatpush1.msra.mxu0 0.0
    %491 = vmatprep.subr.mxu0 0.0
    %492 = vmatpush1.msra.mxu0 0.0
    %493 = vmatprep.subr.mxu0 0.0
    %494 = vmatpush1.msra.mxu0 0.0
    %495 = vmatprep.subr.mxu0 0.0
    %496 = vmatpush1.msra.mxu0 0.0
    %497 = vmatprep.subr.mxu0 0.0
    %498 = vmatpush1.msra.mxu0 0.0
    %499 = vmatprep.subr.mxu0 0.0
    %500 = vmatpush1.msra.mxu0 0.0
    %501 = vmatprep.subr.mxu0 0.0
    %502 = vmatpush1.msra.mxu0 0.0
    %503 = vmatprep.subr.mxu0 0.0
    %504 = vmatpush1.msra.mxu0 0.0
    %505 = vmatprep.subr.mxu0 0.0
    %506 = vmatpush1.msra.mxu0 0.0
    %507 = vmatprep.subr.mxu0 0.0
    %508 = vmatpush1.msra.mxu0 0.0
    %509 = vmatprep.subr.mxu0 0.0
    %510 = vmatpush1.msra.mxu0 0.0
    %511 = vmatprep.subr.mxu0 0.0
    %512 = vmatpush1.msra.mxu0 0.0
    %513 = vmatprep.subr.mxu0 0.0
    %514 = vmatpush1.msra.mxu0 0.0
    %515 = vmatprep.subr.mxu0 0.0
    %516 = vmatpush1.msra.mxu0 0.0
    %517 = vmatprep.subr.mxu0 0.0
    %518 = vmatpush1.msra.mxu0 0.0
    %519 = vmatprep.subr.mxu0 0.0
    %520 = vmatpush1.msra.mxu0 0.0
    %521 = vmatprep.subr.mxu0 0.0
    %522 = vmatpush1.msra.mxu0 0.0
    %523 = vmatprep.subr.mxu0 0.0
    %524 = vmatpush1.msra.mxu0 0.0
    %525 = vmatprep.subr.mxu0 0.0
    %526 = vmatpush1.msra.mxu0 0.0
    %527 = vmatprep.subr.mxu0 0.0
    %528 = vmatpush1.msra.mxu0 0.0
    %529 = vmatprep.subr.mxu0 0.0
    %530 = vmatpush1.msra.mxu0 0.0
    %531 = vmatprep.subr.mxu0 0.0
    %532 = vmatpush1.msra.mxu0 0.0
    %533 = vmatprep.subr.mxu0 0.0
    %534 = vmatpush1.msra.mxu0 0.0
    %535 = vmatprep.subr.mxu0 0.0
    %536 = vmatpush1.msra.mxu0 0.0
    %537 = vmatprep.subr.mxu0 0.0
    %538 = vmatpush1.msra.mxu0 0.0
    %539 = vmatprep.subr.mxu0 0.0
    %540 = vmatpush1.msra.mxu0 0.0
    %541 = vmatprep.subr.mxu0 0.0
    %542 = vmatpush1.msra.mxu0 0.0
    %543 = vmatprep.subr.mxu0 0.0
    %544 = vmatpush1.msra.mxu0 0.0
    %545 = vmatprep.mubr.f32.mxu0 0.0
    %546 = vmatmul.mubr.f32.gmra.mrb[0].mxu0 %v476
    %v547 = vpop.f32.mrb[0].mxu0
    %v548 = vadd.f32 0.0, %v547
    %v549 = vpop.f32.mrb[0].mxu0
    %550 = vmatprep.mubr.f32.mxu0 0.0
    %551 = vmatmul.mubr.f32.gmra.mrb[0].mxu0 %v479
    %v552 = vpop.f32.mrb[0].mxu0
    %v553 = vadd.f32 0.0, %v552
    %v554 = vpop.f32.mrb[0].mxu0
    %555 = vdwg.mxu0
    %556 = vrot.lane.b32.xlu0 %v138, 112
    %v557 = vpop.permute.xlu0 %556
    %558 = vrot.lane.b32.xlu0 %v143, 112
    %v559 = vpop.permute.xlu0 %558
    %560 = vrot.lane.b32.xlu0 %v138, 80
    %v561 = vpop.permute.xlu0 %560
    %562 = vrot.lane.b32.xlu0 %v143, 80
    %v563 = vpop.permute.xlu0 %562
    %v564 = vsel %vm154, %v557, 0
    %v566 = vsel %vm154, %v559, 0
    %v568 = vsel %vm154, %v561, 0
    %v570 = vsel %vm154, %v563, 0
    %572 = vmatprep.subr.mxu0 0.0
    %573 = vmatpush1.xpose.msra.mxu0 %v568
    %574 = vmatprep.subr.mxu0 0.0
    %575 = vmatpush1.xpose.msra.mxu0 %v570
    %576 = vmatprep.subr.mxu0 0.0
    %577 = vmatpush1.xpose.msra.mxu0 0.0
    %578 = vmatprep.subr.mxu0 0.0
    %579 = vmatpush1.xpose.msra.mxu0 0.0
    %580 = vmatprep.subr.mxu0 0.0
    %581 = vmatpush1.xpose.msra.mxu0 0.0
    %582 = vmatprep.subr.mxu0 0.0
    %583 = vmatpush1.xpose.msra.mxu0 0.0
    %584 = vmatprep.subr.mxu0 0.0
    %585 = vmatpush1.xpose.msra.mxu0 0.0
    %586 = vmatprep.subr.mxu0 0.0
    %587 = vmatpush1.xpose.msra.mxu0 0.0
    %588 = vmatprep.subr.mxu0 0.0
    %589 = vmatpush1.xpose.msra.mxu0 0.0
    %590 = vmatprep.subr.mxu0 0.0
    %591 = vmatpush1.xpose.msra.mxu0 0.0
    %592 = vmatprep.subr.mxu0 0.0
    %593 = vmatpush1.xpose.msra.mxu0 0.0
    %594 = vmatprep.subr.mxu0 0.0
    %595 = vmatpush1.xpose.msra.mxu0 0.0
    %596 = vmatprep.subr.mxu0 0.0
    %597 = vmatpush1.xpose.msra.mxu0 0.0
    %598 = vmatprep.subr.mxu0 0.0
    %599 = vmatpush1.xpose.msra.mxu0 0.0
    %600 = vmatprep.subr.mxu0 0.0
    %601 = vmatpush1.xpose.msra.mxu0 0.0
    %602 = vmatprep.subr.mxu0 0.0
    %603 = vmatpush1.xpose.msra.mxu0 0.0
    %604 = vmatprep.subr.mxu0 0.0
    %605 = vmatpush1.xpose.msra.mxu0 0.0
    %606 = vmatprep.subr.mxu0 0.0
    %607 = vmatpush1.xpose.msra.mxu0 0.0
    %608 = vmatprep.subr.mxu0 0.0
    %609 = vmatpush1.xpose.msra.mxu0 0.0
    %610 = vmatprep.subr.mxu0 0.0
    %611 = vmatpush1.xpose.msra.mxu0 0.0
    %612 = vmatprep.subr.mxu0 0.0
    %613 = vmatpush1.xpose.msra.mxu0 0.0
    %614 = vmatprep.subr.mxu0 0.0
    %615 = vmatpush1.xpose.msra.mxu0 0.0
    %616 = vmatprep.subr.mxu0 0.0
    %617 = vmatpush1.xpose.msra.mxu0 0.0
    %618 = vmatprep.subr.mxu0 0.0
    %619 = vmatpush1.xpose.msra.mxu0 0.0
    %620 = vmatprep.subr.mxu0 0.0
    %621 = vmatpush1.xpose.msra.mxu0 0.0
    %622 = vmatprep.subr.mxu0 0.0
    %623 = vmatpush1.xpose.msra.mxu0 0.0
    %624 = vmatprep.subr.mxu0 0.0
    %625 = vmatpush1.xpose.msra.mxu0 0.0
    %626 = vmatprep.subr.mxu0 0.0
    %627 = vmatpush1.xpose.msra.mxu0 0.0
    %628 = vmatprep.subr.mxu0 0.0
    %629 = vmatpush1.xpose.msra.mxu0 0.0
    %630 = vmatprep.subr.mxu0 0.0
    %631 = vmatpush1.xpose.msra.mxu0 0.0
    %632 = vmatprep.subr.mxu0 0.0
    %633 = vmatpush1.xpose.msra.mxu0 0.0
    %634 = vmatprep.subr.mxu0 0.0
    %635 = vmatpush1.xpose.msra.mxu0 0.0
    %636 = vmatprep.mubr.f32.mxu0 0.0
    %637 = vmatmul.mubr.f32.gmra.mrb[0].mxu0 %v564
    %v638 = vpop.f32.mrb[0].mxu0
    %v639 = vadd.f32 0.0, %v638
    %v640 = vpop.f32.mrb[0].mxu0
    %641 = vmatprep.mubr.f32.mxu0 0.0
    %642 = vmatmul.mubr.f32.gmra.mrb[0].mxu0 %v566
    %v643 = vpop.f32.mrb[0].mxu0
    %v644 = vadd.f32 0.0, %v643
    %v645 = vpop.f32.mrb[0].mxu0
    %646 = vdwg.mxu0
    %v647 = vmul.f32 %v639, 0.35355338
    %v648 = vmul.f32 %v644, 0.35355338
    %v649 = vadd.f32 %v647, %v146
    %v650 = vadd.f32 %v648, %v147
    %v651 = vsel %vm242, %v649, -inf
    %652 = vmax.xlane.f32.xlu0 %v651
    %v653 = vpop.xlane.xlu0 %652
    %v654 = vsel %vm242, %v650, -inf
    %655 = vmax.xlane.f32.xlu0 %v654
    %v656 = vpop.xlane.xlu0 %655
    %v657 = vsub.f32 %v649, %v653
    %v658 = vsub.f32 %v650, %v656
    %v659 = vmul.f32 %v657, 1.442695
    %v660 = vpow.pop %v659
    %v661 = vmul.f32 %v658, 1.442695
    %v662 = vpow.pop %v661
    %v663 = vsel %vm242, %v660, 0.0
    %664 = vadd.xlane.f32.xlu0 %v663
    %v665 = vpop.xlane.xlu0 %664
    %v666 = vsel %vm242, %v662, 0.0
    %667 = vadd.xlane.f32.xlu0 %v666
    %v668 = vpop.xlane.xlu0 %667
    %v669 = vrcp.pop %v665
    %v670 = vrcp.pop %v668
    %v671 = vmul.f32 %v660, %v669
    %v672 = vmul.f32 %v662, %v670
    %673 = vrot.lane.b32.xlu0 %v138, 48
    %v674 = vpop.permute.xlu0 %673
    %675 = vrot.lane.b32.xlu0 %v143, 48
    %v676 = vpop.permute.xlu0 %675
    %v680 = vsel %vm242, %v671, 0
    %v683 = vsel %vm242, %v672, 0
    %685 = vmatprep.subr.mxu0 0.0
    %686 = vmatpush1.msra.mxu0 %v674
    %687 = vmatprep.subr.mxu0 0.0
    %688 = vmatpush1.msra.mxu0 %v676
    %689 = vmatprep.subr.mxu0 0.0
    %690 = vmatpush1.msra.mxu0 0.0
    %691 = vmatprep.subr.mxu0 0.0
    %692 = vmatpush1.msra.mxu0 0.0
    %693 = vmatprep.subr.mxu0 0.0
    %694 = vmatpush1.msra.mxu0 0.0
    %695 = vmatprep.subr.mxu0 0.0
    %696 = vmatpush1.msra.mxu0 0.0
    %697 = vmatprep.subr.mxu0 0.0
    %698 = vmatpush1.msra.mxu0 0.0
    %699 = vmatprep.subr.mxu0 0.0
    %700 = vmatpush1.msra.mxu0 0.0
    %701 = vmatprep.subr.mxu0 0.0
    %702 = vmatpush1.msra.mxu0 0.0
    %703 = vmatprep.subr.mxu0 0.0
    %704 = vmatpush1.msra.mxu0 0.0
    %705 = vmatprep.subr.mxu0 0.0
    %706 = vmatpush1.msra.mxu0 0.0
    %707 = vmatprep.subr.mxu0 0.0
    %708 = vmatpush1.msra.mxu0 0.0
    %709 = vmatprep.subr.mxu0 0.0
    %710 = vmatpush1.msra.mxu0 0.0
    %711 = vmatprep.subr.mxu0 0.0
    %712 = vmatpush1.msra.mxu0 0.0
    %713 = vmatprep.subr.mxu0 0.0
    %714 = vmatpush1.msra.mxu0 0.0
    %715 = vmatprep.subr.mxu0 0.0
    %716 = vmatpush1.msra.mxu0 0.0
    %717 = vmatprep.subr.mxu0 0.0
    %718 = vmatpush1.msra.mxu0 0.0
    %719 = vmatprep.subr.mxu0 0.0
    %720 = vmatpush1.msra.mxu0 0.0
    %721 = vmatprep.subr.mxu0 0.0
    %722 = vmatpush1.msra.mxu0 0.0
    %723 = vmatprep.subr.mxu0 0.0
    %724 = vmatpush1.msra.mxu0 0.0
    %725 = vmatprep.subr.mxu0 0.0
    %726 = vmatpush1.msra.mxu0 0.0
    %727 = vmatprep.subr.mxu0 0.0
    %728 = vmatpush1.msra.mxu0 0.0
    %729 = vmatprep.subr.mxu0 0.0
    %730 = vmatpush1.msra.mxu0 0.0
    %731 = vmatprep.subr.mxu0 0.0
    %732 = vmatpush1.msra.mxu0 0.0
    %733 = vmatprep.subr.mxu0 0.0
    %734 = vmatpush1.msra.mxu0 0.0
    %735 = vmatprep.subr.mxu0 0.0
    %736 = vmatpush1.msra.mxu0 0.0
    %737 = vmatprep.subr.mxu0 0.0
    %738 = vmatpush1.msra.mxu0 0.0
    %739 = vmatprep.subr.mxu0 0.0
    %740 = vmatpush1.msra.mxu0 0.0
    %741 = vmatprep.subr.mxu0 0.0
    %742 = vmatpush1.msra.mxu0 0.0
    %743 = vmatprep.subr.mxu0 0.0
    %744 = vmatpush1.msra.mxu0 0.0
    %745 = vmatprep.subr.mxu0 0.0
    %746 = vmatpush1.msra.mxu0 0.0
    %747 = vmatprep.subr.mxu0 0.0
    %748 = vmatpush1.msra.mxu0 0.0
    %749 = vmatprep.mubr.f32.mxu0 0.0
    %750 = vmatmul.mubr.f32.gmra.mrb[0].mxu0 %v680
    %v751 = vpop.f32.mrb[0].mxu0
    %v752 = vadd.f32 0.0, %v751
    %v753 = vpop.f32.mrb[0].mxu0
    %754 = vmatprep.mubr.f32.mxu0 0.0
    %755 = vmatmul.mubr.f32.gmra.mrb[0].mxu0 %v683
    %v756 = vpop.f32.mrb[0].mxu0
    %v757 = vadd.f32 0.0, %v756
    %v758 = vpop.f32.mrb[0].mxu0
    %759 = vdwg.mxu0
    %760 = vrot.lane.b32.xlu0 %v138, 104
    %v761 = vpop.permute.xlu0 %760
    %762 = vrot.lane.b32.xlu0 %v143, 104
    %v763 = vpop.permute.xlu0 %762
    %764 = vrot.lane.b32.xlu0 %v138, 72
    %v765 = vpop.permute.xlu0 %764
    %766 = vrot.lane.b32.xlu0 %v143, 72
    %v767 = vpop.permute.xlu0 %766
    %v768 = vsel %vm154, %v761, 0
    %v770 = vsel %vm154, %v763, 0
    %v772 = vsel %vm154, %v765, 0
    %v774 = vsel %vm154, %v767, 0
    %776 = vmatprep.subr.mxu0 0.0
    %777 = vmatpush1.xpose.msra.mxu0 %v772
    %778 = vmatprep.subr.mxu0 0.0
    %779 = vmatpush1.xpose.msra.mxu0 %v774
    %780 = vmatprep.subr.mxu0 0.0
    %781 = vmatpush1.xpose.msra.mxu0 0.0
    %782 = vmatprep.subr.mxu0 0.0
    %783 = vmatpush1.xpose.msra.mxu0 0.0
    %784 = vmatprep.subr.mxu0 0.0
    %785 = vmatpush1.xpose.msra.mxu0 0.0
    %786 = vmatprep.subr.mxu0 0.0
    %787 = vmatpush1.xpose.msra.mxu0 0.0
    %788 = vmatprep.subr.mxu0 0.0
    %789 = vmatpush1.xpose.msra.mxu0 0.0
    %790 = vmatprep.subr.mxu0 0.0
    %791 = vmatpush1.xpose.msra.mxu0 0.0
    %792 = vmatprep.subr.mxu0 0.0
    %793 = vmatpush1.xpose.msra.mxu0 0.0
    %794 = vmatprep.subr.mxu0 0.0
    %795 = vmatpush1.xpose.msra.mxu0 0.0
    %796 = vmatprep.subr.mxu0 0.0
    %797 = vmatpush1.xpose.msra.mxu0 0.0
    %798 = vmatprep.subr.mxu0 0.0
    %799 = vmatpush1.xpose.msra.mxu0 0.0
    %800 = vmatprep.subr.mxu0 0.0
    %801 = vmatpush1.xpose.msra.mxu0 0.0
    %802 = vmatprep.subr.mxu0 0.0
    %803 = vmatpush1.xpose.msra.mxu0 0.0
    %804 = vmatprep.subr.mxu0 0.0
    %805 = vmatpush1.xpose.msra.mxu0 0.0
    %806 = vmatprep.subr.mxu0 0.0
    %807 = vmatpush1.xpose.msra.mxu0 0.0
    %808 = vmatprep.subr.mxu0 0.0
    %809 = vmatpush1.xpose.msra.mxu0 0.0
    %810 = vmatprep.subr.mxu0 0.0
    %811 = vmatpush1.xpose.msra.mxu0 0.0
    %812 = vmatprep.subr.mxu0 0.0
    %813 = vmatpush1.xpose.msra.mxu0 0.0
    %814 = vmatprep.subr.mxu0 0.0
    %815 = vmatpush1.xpose.msra.mxu0 0.0
    %816 = vmatprep.subr.mxu0 0.0
    %817 = vmatpush1.xpose.msra.mxu0 0.0
    %818 = vmatprep.subr.mxu0 0.0
    %819 = vmatpush1.xpose.msra.mxu0 0.0
    %820 = vmatprep.subr.mxu0 0.0
    %821 = vmatpush1.xpose.msra.mxu0 0.0
    %822 = vmatprep.subr.mxu0 0.0
    %823 = vmatpush1.xpose.msra.mxu0 0.0
    %824 = vmatprep.subr.mxu0 0.0
    %825 = vmatpush1.xpose.msra.mxu0 0.0
    %826 = vmatprep.subr.mxu0 0.0
    %827 = vmatpush1.xpose.msra.mxu0 0.0
    %828 = vmatprep.subr.mxu0 0.0
    %829 = vmatpush1.xpose.msra.mxu0 0.0
    %830 = vmatprep.subr.mxu0 0.0
    %831 = vmatpush1.xpose.msra.mxu0 0.0
    %832 = vmatprep.subr.mxu0 0.0
    %833 = vmatpush1.xpose.msra.mxu0 0.0
    %834 = vmatprep.subr.mxu0 0.0
    %835 = vmatpush1.xpose.msra.mxu0 0.0
    %836 = vmatprep.subr.mxu0 0.0
    %837 = vmatpush1.xpose.msra.mxu0 0.0
    %838 = vmatprep.subr.mxu0 0.0
    %839 = vmatpush1.xpose.msra.mxu0 0.0
    %840 = vmatprep.mubr.f32.mxu0 0.0
    %841 = vmatmul.mubr.f32.gmra.mrb[0].mxu0 %v768
    %v842 = vpop.f32.mrb[0].mxu0
    %v843 = vadd.f32 0.0, %v842
    %v844 = vpop.f32.mrb[0].mxu0
    %845 = vmatprep.mubr.f32.mxu0 0.0
    %846 = vmatmul.mubr.f32.gmra.mrb[0].mxu0 %v770
    %v847 = vpop.f32.mrb[0].mxu0
    %v848 = vadd.f32 0.0, %v847
    %v849 = vpop.f32.mrb[0].mxu0
    %850 = vdwg.mxu0
    %v851 = vmul.f32 %v843, 0.35355338
    %v852 = vmul.f32 %v848, 0.35355338
    %v853 = vadd.f32 %v851, %v146
    %v854 = vadd.f32 %v852, %v147
    %v855 = vsel %vm242, %v853, -inf
    %856 = vmax.xlane.f32.xlu0 %v855
    %v857 = vpop.xlane.xlu0 %856
    %v858 = vsel %vm242, %v854, -inf
    %859 = vmax.xlane.f32.xlu0 %v858
    %v860 = vpop.xlane.xlu0 %859
    %v861 = vsub.f32 %v853, %v857
    %v862 = vsub.f32 %v854, %v860
    %v863 = vmul.f32 %v861, 1.442695
    %v864 = vpow.pop %v863
    %v865 = vmul.f32 %v862, 1.442695
    %v866 = vpow.pop %v865
    %v867 = vsel %vm242, %v864, 0.0
    %868 = vadd.xlane.f32.xlu0 %v867
    %v869 = vpop.xlane.xlu0 %868
    %v870 = vsel %vm242, %v866, 0.0
    %871 = vadd.xlane.f32.xlu0 %v870
    %v872 = vpop.xlane.xlu0 %871
    %v873 = vrcp.pop %v869
    %v874 = vrcp.pop %v872
    %v875 = vmul.f32 %v864, %v873
    %v876 = vmul.f32 %v866, %v874
    %877 = vrot.lane.b32.xlu0 %v138, 40
    %v878 = vpop.permute.xlu0 %877
    %879 = vrot.lane.b32.xlu0 %v143, 40
    %v880 = vpop.permute.xlu0 %879
    %v884 = vsel %vm242, %v875, 0
    %v887 = vsel %vm242, %v876, 0
    %889 = vmatprep.subr.mxu0 0.0
    %890 = vmatpush1.msra.mxu0 %v878
    %891 = vmatprep.subr.mxu0 0.0
    %892 = vmatpush1.msra.mxu0 %v880
    %893 = vmatprep.subr.mxu0 0.0
    %894 = vmatpush1.msra.mxu0 0.0
    %895 = vmatprep.subr.mxu0 0.0
    %896 = vmatpush1.msra.mxu0 0.0
    %897 = vmatprep.subr.mxu0 0.0
    %898 = vmatpush1.msra.mxu0 0.0
    %899 = vmatprep.subr.mxu0 0.0
    %900 = vmatpush1.msra.mxu0 0.0
    %901 = vmatprep.subr.mxu0 0.0
    %902 = vmatpush1.msra.mxu0 0.0
    %903 = vmatprep.subr.mxu0 0.0
    %904 = vmatpush1.msra.mxu0 0.0
    %905 = vmatprep.subr.mxu0 0.0
    %906 = vmatpush1.msra.mxu0 0.0
    %907 = vmatprep.subr.mxu0 0.0
    %908 = vmatpush1.msra.mxu0 0.0
    %909 = vmatprep.subr.mxu0 0.0
    %910 = vmatpush1.msra.mxu0 0.0
    %911 = vmatprep.subr.mxu0 0.0
    %912 = vmatpush1.msra.mxu0 0.0
    %913 = vmatprep.subr.mxu0 0.0
    %914 = vmatpush1.msra.mxu0 0.0
    %915 = vmatprep.subr.mxu0 0.0
    %916 = vmatpush1.msra.mxu0 0.0
    %917 = vmatprep.subr.mxu0 0.0
    %918 = vmatpush1.msra.mxu0 0.0
    %919 = vmatprep.subr.mxu0 0.0
    %920 = vmatpush1.msra.mxu0 0.0
    %921 = vmatprep.subr.mxu0 0.0
    %922 = vmatpush1.msra.mxu0 0.0
    %923 = vmatprep.subr.mxu0 0.0
    %924 = vmatpush1.msra.mxu0 0.0
    %925 = vmatprep.subr.mxu0 0.0
    %926 = vmatpush1.msra.mxu0 0.0
    %927 = vmatprep.subr.mxu0 0.0
    %928 = vmatpush1.msra.mxu0 0.0
    %929 = vmatprep.subr.mxu0 0.0
    %930 = vmatpush1.msra.mxu0 0.0
    %931 = vmatprep.subr.mxu0 0.0
    %932 = vmatpush1.msra.mxu0 0.0
    %933 = vmatprep.subr.mxu0 0.0
    %934 = vmatpush1.msra.mxu0 0.0
    %935 = vmatprep.subr.mxu0 0.0
    %936 = vmatpush1.msra.mxu0 0.0
    %937 = vmatprep.subr.mxu0 0.0
    %938 = vmatpush1.msra.mxu0 0.0
    %939 = vmatprep.subr.mxu0 0.0
    %940 = vmatpush1.msra.mxu0 0.0
    %941 = vmatprep.subr.mxu0 0.0
    %942 = vmatpush1.msra.mxu0 0.0
    %943 = vmatprep.subr.mxu0 0.0
    %944 = vmatpush1.msra.mxu0 0.0
    %945 = vmatprep.subr.mxu0 0.0
    %946 = vmatpush1.msra.mxu0 0.0
    %947 = vmatprep.subr.mxu0 0.0
    %948 = vmatpush1.msra.mxu0 0.0
    %949 = vmatprep.subr.mxu0 0.0
    %950 = vmatpush1.msra.mxu0 0.0
    %951 = vmatprep.subr.mxu0 0.0
    %952 = vmatpush1.msra.mxu0 0.0
    %953 = vmatprep.mubr.f32.mxu0 0.0
    %954 = vmatmul.mubr.f32.gmra.mrb[0].mxu0 %v884
    %v955 = vpop.f32.mrb[0].mxu0
    %v956 = vadd.f32 0.0, %v955
    %v957 = vpop.f32.mrb[0].mxu0
    %958 = vmatprep.mubr.f32.mxu0 0.0
    %959 = vmatmul.mubr.f32.gmra.mrb[0].mxu0 %v887
    %v960 = vpop.f32.mrb[0].mxu0
    %v961 = vadd.f32 0.0, %v960
    %v962 = vpop.f32.mrb[0].mxu0
    %963 = vdwg.mxu0
    %966 = vrot.lane.b32.xlu0 %v548, 8
    %v967 = vpop.permute.xlu0 %966
    %968 = vrot.lane.b32.xlu0 %v553, 8
    %v969 = vpop.permute.xlu0 %968
    %974 = vrot.lane.b32.xlu0 %v752, 16
    %v975 = vpop.permute.xlu0 %974
    %976 = vrot.lane.b32.xlu0 %v757, 16
    %v977 = vpop.permute.xlu0 %976
    %982 = vrot.lane.b32.xlu0 %v956, 24
    %v983 = vpop.permute.xlu0 %982
    %984 = vrot.lane.b32.xlu0 %v961, 24
    %v985 = vpop.permute.xlu0 %984
    %v988 = vsel %vm154, %v344, %v967
    %v989 = vsel %vm154, %v349, %v969
    %v990 = vsel %vm242, %v988, %v975
    %v991 = vsel %vm242, %v989, %v977
    %vm992 = vcmask 195584
    %v993 = vsel %vm992, %v990, %v983
    %v994 = vsel %vm992, %v991, %v985
    %v995 = vld [vmem:[%s2] sm:$0xff]
    %v996 = vld [vmem:[%s2 + $0x8] sm:$0xff]
    %v997 = vld [vmem:[%s2 + $0x10] sm:$0xff]
    %v998 = vld [vmem:[%s2 + $0x18] sm:$0xff]
    %v999 = vlaneseq
    %v1000 = vshrl.u32 %v999, 7
    %v1001 = vsub.s32 1, %v1000
    %v1002 = vrot.slane %v55, %v1001
    %v1004 = vsel %vm64, %v993, 0
    %v1007 = vsel %vm64, %v994, 0
    %1009 = vmatprep.subr.mxu0 0.0
    %1010 = vmatpush1.msra.mxu0 %v995
    %1011 = vmatprep.subr.mxu0 0.0
    %1012 = vmatpush1.msra.mxu0 %v996
    %1013 = vmatprep.subr.mxu0 0.0
    %1014 = vmatpush1.msra.mxu0 %v997
    %1015 = vmatprep.subr.mxu0 0.0
    %1016 = vmatpush1.msra.mxu0 %v998
    %1017 = vmatprep.subr.mxu0 0.0
    %1018 = vmatpush1.msra.mxu0 0.0
    %1019 = vmatprep.subr.mxu0 0.0
    %1020 = vmatpush1.msra.mxu0 0.0
    %1021 = vmatprep.subr.mxu0 0.0
    %1022 = vmatpush1.msra.mxu0 0.0
    %1023 = vmatprep.subr.mxu0 0.0
    %1024 = vmatpush1.msra.mxu0 0.0
    %1025 = vmatprep.subr.mxu0 0.0
    %1026 = vmatpush1.msra.mxu0 0.0
    %1027 = vmatprep.subr.mxu0 0.0
    %1028 = vmatpush1.msra.mxu0 0.0
    %1029 = vmatprep.subr.mxu0 0.0
    %1030 = vmatpush1.msra.mxu0 0.0
    %1031 = vmatprep.subr.mxu0 0.0
    %1032 = vmatpush1.msra.mxu0 0.0
    %1033 = vmatprep.subr.mxu0 0.0
    %1034 = vmatpush1.msra.mxu0 0.0
    %1035 = vmatprep.subr.mxu0 0.0
    %1036 = vmatpush1.msra.mxu0 0.0
    %1037 = vmatprep.subr.mxu0 0.0
    %1038 = vmatpush1.msra.mxu0 0.0
    %1039 = vmatprep.subr.mxu0 0.0
    %1040 = vmatpush1.msra.mxu0 0.0
    %1041 = vmatprep.subr.mxu0 0.0
    %1042 = vmatpush1.msra.mxu0 0.0
    %1043 = vmatprep.subr.mxu0 0.0
    %1044 = vmatpush1.msra.mxu0 0.0
    %1045 = vmatprep.subr.mxu0 0.0
    %1046 = vmatpush1.msra.mxu0 0.0
    %1047 = vmatprep.subr.mxu0 0.0
    %1048 = vmatpush1.msra.mxu0 0.0
    %1049 = vmatprep.subr.mxu0 0.0
    %1050 = vmatpush1.msra.mxu0 0.0
    %1051 = vmatprep.subr.mxu0 0.0
    %1052 = vmatpush1.msra.mxu0 0.0
    %1053 = vmatprep.subr.mxu0 0.0
    %1054 = vmatpush1.msra.mxu0 0.0
    %1055 = vmatprep.subr.mxu0 0.0
    %1056 = vmatpush1.msra.mxu0 0.0
    %1057 = vmatprep.subr.mxu0 0.0
    %1058 = vmatpush1.msra.mxu0 0.0
    %1059 = vmatprep.subr.mxu0 0.0
    %1060 = vmatpush1.msra.mxu0 0.0
    %1061 = vmatprep.subr.mxu0 0.0
    %1062 = vmatpush1.msra.mxu0 0.0
    %1063 = vmatprep.subr.mxu0 0.0
    %1064 = vmatpush1.msra.mxu0 0.0
    %1065 = vmatprep.subr.mxu0 0.0
    %1066 = vmatpush1.msra.mxu0 0.0
    %1067 = vmatprep.subr.mxu0 0.0
    %1068 = vmatpush1.msra.mxu0 0.0
    %1069 = vmatprep.subr.mxu0 0.0
    %1070 = vmatpush1.msra.mxu0 0.0
    %1071 = vmatprep.subr.mxu0 0.0
    %1072 = vmatpush1.msra.mxu0 0.0
    %1073 = vmatprep.mubr.f32.mxu0 0.0
    %1074 = vmatmul.mubr.f32.gmra.mrb[0].mxu0 %v1004
    %v1075 = vpop.f32.mrb[0].mxu0
    %v1076 = vadd.f32 %v1002, %v1075
    %v1077 = vpop.f32.mrb[0].mxu0
    %1078 = vmatprep.mubr.f32.mxu0 0.0
    %1079 = vmatmul.mubr.f32.gmra.mrb[0].mxu0 %v1007
    %v1080 = vpop.f32.mrb[0].mxu0
    %v1081 = vadd.f32 %v1002, %v1080
    %v1082 = vpop.f32.mrb[0].mxu0
    %1083 = vdwg.mxu0
    %v1084 = vadd.f32 %v53, %v1076
    %v1085 = vadd.f32 %v54, %v1081
    %v1086 = vsel %vm64, %v1084, 0.0
    %1087 = vadd.xlane.f32.xlu0 %v1086
    %v1088 = vpop.xlane.xlu0 %1087
    %v1089 = vsel %vm64, %v1085, 0.0
    %1090 = vadd.xlane.f32.xlu0 %v1089
    %v1091 = vpop.xlane.xlu0 %1090
    %v1092 = vrcp.pop 32.0
    %v1093 = vmul.f32 %v1088, %v1092
    %v1094 = vmul.f32 %v1091, %v1092
    %v1095 = vsub.f32 %v1084, %v1093
    %v1096 = vsub.f32 %v1085, %v1094
    %v1097 = vmul.f32 %v1095, %v1095
    %v1098 = vmul.f32 %v1096, %v1096
    %v1099 = vsel %vm64, %v1097, 0.0
    %1100 = vadd.xlane.f32.xlu0 %v1099
    %v1101 = vpop.xlane.xlu0 %1100
    %v1102 = vsel %vm64, %v1098, 0.0
    %1103 = vadd.xlane.f32.xlu0 %v1102
    %v1104 = vpop.xlane.xlu0 %1103
    %v1105 = vmul.f32 %v1101, %v1092
    %v1106 = vmul.f32 %v1104, %v1092
    %v1107 = vadd.f32 %v1105, 1e-05
    %v1108 = vadd.f32 %v1106, 1e-05
    %v1109 = vrsqrt.pop %v1107
    %v1110 = vrsqrt.pop %v1108
    %v1111 = vmul.f32 %v1095, %v1109
    %v1112 = vmul.f32 %v1096, %v1110
    %v1113 = vlaneseq
    %v1114 = vshrl.u32 %v1113, 7
    %v1115 = vsub.s32 4, %v1114
    %v1116 = vrot.slane %v55, %v1115
    %v1117 = vmul.f32 %v1111, %v1116
    %v1118 = vmul.f32 %v1112, %v1116
    %v1119 = vlaneseq
    %v1120 = vshrl.u32 %v1119, 7
    %v1121 = vsub.s32 5, %v1120
    %v1122 = vrot.slane %v55, %v1121
    %v1123 = vadd.f32 %v1117, %v1122
    %v1124 = vadd.f32 %v1118, %v1122
    %v1125 = vld [vmem:[%s3] sm:$0xff]
    %v1126 = vld [vmem:[%s3 + $0x8] sm:$0xff]
    %v1127 = vld [vmem:[%s3 + $0x10] sm:$0xff]
    %v1128 = vld [vmem:[%s3 + $0x18] sm:$0xff]
    %v1129 = vlaneseq
    %v1130 = vshrl.u32 %v1129, 7
    %v1131 = vsub.s32 2, %v1130
    %v1132 = vrot.slane %v55, %v1131
    %v1134 = vsel %vm64, %v1123, 0
    %v1137 = vsel %vm64, %v1124, 0
    %1139 = vmatprep.subr.mxu0 0.0
    %1140 = vmatpush1.msra.mxu0 %v1125
    %1141 = vmatprep.subr.mxu0 0.0
    %1142 = vmatpush1.msra.mxu0 %v1126
    %1143 = vmatprep.subr.mxu0 0.0
    %1144 = vmatpush1.msra.mxu0 %v1127
    %1145 = vmatprep.subr.mxu0 0.0
    %1146 = vmatpush1.msra.mxu0 %v1128
    %1147 = vmatprep.subr.mxu0 0.0
    %1148 = vmatpush1.msra.mxu0 0.0
    %1149 = vmatprep.subr.mxu0 0.0
    %1150 = vmatpush1.msra.mxu0 0.0
    %1151 = vmatprep.subr.mxu0 0.0
    %1152 = vmatpush1.msra.mxu0 0.0
    %1153 = vmatprep.subr.mxu0 0.0
    %1154 = vmatpush1.msra.mxu0 0.0
    %1155 = vmatprep.subr.mxu0 0.0
    %1156 = vmatpush1.msra.mxu0 0.0
    %1157 = vmatprep.subr.mxu0 0.0
    %1158 = vmatpush1.msra.mxu0 0.0
    %1159 = vmatprep.subr.mxu0 0.0
    %1160 = vmatpush1.msra.mxu0 0.0
    %1161 = vmatprep.subr.mxu0 0.0
    %1162 = vmatpush1.msra.mxu0 0.0
    %1163 = vmatprep.subr.mxu0 0.0
    %1164 = vmatpush1.msra.mxu0 0.0
    %1165 = vmatprep.subr.mxu0 0.0
    %1166 = vmatpush1.msra.mxu0 0.0
    %1167 = vmatprep.subr.mxu0 0.0
    %1168 = vmatpush1.msra.mxu0 0.0
    %1169 = vmatprep.subr.mxu0 0.0
    %1170 = vmatpush1.msra.mxu0 0.0
    %1171 = vmatprep.subr.mxu0 0.0
    %1172 = vmatpush1.msra.mxu0 0.0
    %1173 = vmatprep.subr.mxu0 0.0
    %1174 = vmatpush1.msra.mxu0 0.0
    %1175 = vmatprep.subr.mxu0 0.0
    %1176 = vmatpush1.msra.mxu0 0.0
    %1177 = vmatprep.subr.mxu0 0.0
    %1178 = vmatpush1.msra.mxu0 0.0
    %1179 = vmatprep.subr.mxu0 0.0
    %1180 = vmatpush1.msra.mxu0 0.0
    %1181 = vmatprep.subr.mxu0 0.0
    %1182 = vmatpush1.msra.mxu0 0.0
    %1183 = vmatprep.subr.mxu0 0.0
    %1184 = vmatpush1.msra.mxu0 0.0
    %1185 = vmatprep.subr.mxu0 0.0
    %1186 = vmatpush1.msra.mxu0 0.0
    %1187 = vmatprep.subr.mxu0 0.0
    %1188 = vmatpush1.msra.mxu0 0.0
    %1189 = vmatprep.subr.mxu0 0.0
    %1190 = vmatpush1.msra.mxu0 0.0
    %1191 = vmatprep.subr.mxu0 0.0
    %1192 = vmatpush1.msra.mxu0 0.0
    %1193 = vmatprep.subr.mxu0 0.0
    %1194 = vmatpush1.msra.mxu0 0.0
    %1195 = vmatprep.subr.mxu0 0.0
    %1196 = vmatpush1.msra.mxu0 0.0
    %1197 = vmatprep.subr.mxu0 0.0
    %1198 = vmatpush1.msra.mxu0 0.0
    %1199 = vmatprep.subr.mxu0 0.0
    %1200 = vmatpush1.msra.mxu0 0.0
    %1201 = vmatprep.subr.mxu0 0.0
    %1202 = vmatpush1.msra.mxu0 0.0
    %1203 = vmatprep.mubr.f32.mxu0 0.0
    %1204 = vmatmul.mubr.f32.gmra.mrb[0].mxu0 %v1134
    %v1205 = vpop.f32.mrb[0].mxu0
    %v1206 = vadd.f32 %v1132, %v1205
    %v1207 = vpop.f32.mrb[0].mxu0
    %1208 = vmatprep.mubr.f32.mxu0 0.0
    %1209 = vmatmul.mubr.f32.gmra.mrb[0].mxu0 %v1137
    %v1210 = vpop.f32.mrb[0].mxu0
    %v1211 = vadd.f32 %v1132, %v1210
    %v1212 = vpop.f32.mrb[0].mxu0
    %1213 = vdwg.mxu0
    %v1214 = vmax.f32 %v1206, 0.0
    %v1215 = vmax.f32 %v1211, 0.0
    %v1216 = vld [vmem:[%s4] sm:$0xff]
    %v1217 = vld [vmem:[%s4 + $0x8] sm:$0xff]
    %v1218 = vld [vmem:[%s4 + $0x10] sm:$0xff]
    %v1219 = vld [vmem:[%s4 + $0x18] sm:$0xff]
    %v1220 = vld [vmem:[%s4 + $0x20] sm:$0xff]
    %v1221 = vld [vmem:[%s4 + $0x28] sm:$0xff]
    %v1222 = vld [vmem:[%s4 + $0x30] sm:$0xff]
    %v1223 = vld [vmem:[%s4 + $0x38] sm:$0xff]
    %v1224 = vlaneseq
    %v1225 = vshrl.u32 %v1224, 7
    %v1226 = vsub.s32 3, %v1225
    %v1227 = vrot.slane %v55, %v1226
    %vm1228 = vcmask 523264
    %v1230 = vsel %vm1228, %v1214, 0
    %v1233 = vsel %vm1228, %v1215, 0
    %1235 = vmatprep.subr.mxu0 0.0
    %1236 = vmatpush1.msra.mxu0 %v1216
    %1237 = vmatprep.subr.mxu0 0.0
    %1238 = vmatpush1.msra.mxu0 %v1217
    %1239 = vmatprep.subr.mxu0 0.0
    %1240 = vmatpush1.msra.mxu0 %v1218
    %1241 = vmatprep.subr.mxu0 0.0
    %1242 = vmatpush1.msra.mxu0 %v1219
    %1243 = vmatprep.subr.mxu0 0.0
    %1244 = vmatpush1.msra.mxu0 %v1220
    %1245 = vmatprep.subr.mxu0 0.0
    %1246 = vmatpush1.msra.mxu0 %v1221
    %1247 = vmatprep.subr.mxu0 0.0
    %1248 = vmatpush1.msra.mxu0 %v1222
    %1249 = vmatprep.subr.mxu0 0.0
    %1250 = vmatpush1.msra.mxu0 %v1223
    %1251 = vmatprep.subr.mxu0 0.0
    %1252 = vmatpush1.msra.mxu0 0.0
    %1253 = vmatprep.subr.mxu0 0.0
    %1254 = vmatpush1.msra.mxu0 0.0
    %1255 = vmatprep.subr.mxu0 0.0
    %1256 = vmatpush1.msra.mxu0 0.0
    %1257 = vmatprep.subr.mxu0 0.0
    %1258 = vmatpush1.msra.mxu0 0.0
    %1259 = vmatprep.subr.mxu0 0.0
    %1260 = vmatpush1.msra.mxu0 0.0
    %1261 = vmatprep.subr.mxu0 0.0
    %1262 = vmatpush1.msra.mxu0 0.0
    %1263 = vmatprep.subr.mxu0 0.0
    %1264 = vmatpush1.msra.mxu0 0.0
    %1265 = vmatprep.subr.mxu0 0.0
    %1266 = vmatpush1.msra.mxu0 0.0
    %1267 = vmatprep.subr.mxu0 0.0
    %1268 = vmatpush1.msra.mxu0 0.0
    %1269 = vmatprep.subr.mxu0 0.0
    %1270 = vmatpush1.msra.mxu0 0.0
    %1271 = vmatprep.subr.mxu0 0.0
    %1272 = vmatpush1.msra.mxu0 0.0
    %1273 = vmatprep.subr.mxu0 0.0
    %1274 = vmatpush1.msra.mxu0 0.0
    %1275 = vmatprep.subr.mxu0 0.0
    %1276 = vmatpush1.msra.mxu0 0.0
    %1277 = vmatprep.subr.mxu0 0.0
    %1278 = vmatpush1.msra.mxu0 0.0
    %1279 = vmatprep.subr.mxu0 0.0
    %1280 = vmatpush1.msra.mxu0 0.0
    %1281 = vmatprep.subr.mxu0 0.0
    %1282 = vmatpush1.msra.mxu0 0.0
    %1283 = vmatprep.subr.mxu0 0.0
    %1284 = vmatpush1.msra.mxu0 0.0
    %1285 = vmatprep.subr.mxu0 0.0
    %1286 = vmatpush1.msra.mxu0 0.0
    %1287 = vmatprep.subr.mxu0 0.0
    %1288 = vmatpush1.msra.mxu0 0.0
    %1289 = vmatprep.subr.mxu0 0.0
    %1290 = vmatpush1.msra.mxu0 0.0
    %1291 = vmatprep.subr.mxu0 0.0
    %1292 = vmatpush1.msra.mxu0 0.0
    %1293 = vmatprep.subr.mxu0 0.0
    %1294 = vmatpush1.msra.mxu0 0.0
    %1295 = vmatprep.subr.mxu0 0.0
    %1296 = vmatpush1.msra.mxu0 0.0
    %1297 = vmatprep.subr.mxu0 0.0
    %1298 = vmatpush1.msra.mxu0 0.0
    %1299 = vmatprep.mubr.f32.mxu0 0.0
    %1300 = vmatmul.mubr.f32.gmra.mrb[0].mxu0 %v1230
    %v1301 = vpop.f32.mrb[0].mxu0
    %v1302 = vadd.f32 %v1227, %v1301
    %v1303 = vpop.f32.mrb[0].mxu0
    %1304 = vmatprep.mubr.f32.mxu0 0.0
    %1305 = vmatmul.mubr.f32.gmra.mrb[0].mxu0 %v1233
    %v1306 = vpop.f32.mrb[0].mxu0
    %v1307 = vadd.f32 %v1227, %v1306
    %v1308 = vpop.f32.mrb[0].mxu0
    %1309 = vdwg.mxu0
    %v1310 = vadd.f32 %v1123, %v1302
    %v1311 = vadd.f32 %v1124, %v1307
    %v1312 = vsel %vm64, %v1310, 0.0
    %1313 = vadd.xlane.f32.xlu0 %v1312
    %v1314 = vpop.xlane.xlu0 %1313
    %v1315 = vsel %vm64, %v1311, 0.0
    %1316 = vadd.xlane.f32.xlu0 %v1315
    %v1317 = vpop.xlane.xlu0 %1316
    %v1318 = vmul.f32 %v1314, %v1092
    %v1319 = vmul.f32 %v1317, %v1092
    %v1320 = vsub.f32 %v1310, %v1318
    %v1321 = vsub.f32 %v1311, %v1319
    %v1322 = vmul.f32 %v1320, %v1320
    %v1323 = vmul.f32 %v1321, %v1321
    %v1324 = vsel %vm64, %v1322, 0.0
    %1325 = vadd.xlane.f32.xlu0 %v1324
    %v1326 = vpop.xlane.xlu0 %1325
    %v1327 = vsel %vm64, %v1323, 0.0
    %1328 = vadd.xlane.f32.xlu0 %v1327
    %v1329 = vpop.xlane.xlu0 %1328
    %v1330 = vmul.f32 %v1326, %v1092
    %v1331 = vmul.f32 %v1329, %v1092
    %v1332 = vadd.f32 %v1330, 1e-05
    %v1333 = vadd.f32 %v1331, 1e-05
    %v1334 = vrsqrt.pop %v1332
    %v1335 = vrsqrt.pop %v1333
    %v1336 = vmul.f32 %v1320, %v1334
    %v1337 = vmul.f32 %v1321, %v1335
    %v1338 = vlaneseq
    %v1339 = vshrl.u32 %v1338, 7
    %v1340 = vsub.s32 6, %v1339
    %v1341 = vrot.slane %v55, %v1340
    %v1342 = vmul.f32 %v1336, %v1341
    %v1343 = vmul.f32 %v1337, %v1341
    %v1344 = vlaneseq
    %v1345 = vshrl.u32 %v1344, 7
    %v1346 = vsub.s32 7, %v1345
    %v1347 = vrot.slane %v55, %v1346
    %v1348 = vadd.f32 %v1342, %v1347
    %v1349 = vadd.f32 %v1343, %v1347
    %1350 = vst.msk [vmem:[#allocation7] sm:$0xff] %vm64, %v1348
    %1351 = vst.msk [vmem:[#allocation7 + $0x8] sm:$0xff] %vm64, %v1349
    // Predicated region
    $region38: #{tpu_custom_call.1} parent=1 // pred_check
      _
    $region39: #{tpu_custom_call.1} parent=1 // pred_check_branch
      %1353 = sbr.rel (0) target = $region41
    $region40: #{tpu_custom_call.1} parent=1 // pred_region
      %s1355 = ssub.s32 256, 256
      %1356 = vsyncadd [#allocation4], %s1355
      %s1357 = sshll.u32 [#allocation7], 4
      %s1358 = int_to_ptr.vmem [resolvable:$true] %s1357
      %1363 = dma.vmem_to_hbm [thread:$0]  %s1358, 256, %s7, [#allocation4], 128, 128, 8
    $region41: #{tpu_custom_call.1} parent=1 // pred_fallthru
      _
    // Predicated region
    $region42: #{tpu_custom_call.1} parent=1 // pred_check
      _
    $region43: #{tpu_custom_call.1} parent=1 // pred_check_branch
      %1365 = sbr.rel (0) target = $region45
    $region44: #{tpu_custom_call.1} parent=1 // pred_region
      %1366 = dma.done [#allocation4], 256
    $region45: #{tpu_custom_call.1} parent=1 // pred_fallthru
      _
    %1367 = vsyncpa [#allocation3], 1
    %1368 = vsyncpa [#allocation6], 1
    %1369 = vsyncpa [#allocation4], 1

</llo_original>
